<compile_context>
chip_gen: v5e
topology: v5e:2x2
jax: 0.10.0
libtpu: 0.0.40
codegen_flags: <defaults>
</compile_context>

<pallas_src>
import numpy as np
import jax
import jax.numpy as jnp
from jax.experimental import pallas as pl
from jax.experimental.pallas import tpu as pltpu

# ---- hyper-parameters matching BitterGCN.__init__ ----
NUM_REC = 22          # num_rec
NUM_NODE_FEAT = 16    # num_node_features
NUM_EDGE_FEAT = 6     # num_edge_features
H1, H2 = 32, 8        # GATv2 hidden sizes
BN_EPS = 1e-5
NEG_SLOPE = 0.2       # GATv2 leaky_relu negative slope
SOFTMAX_EPS = 1e-16   # PyG segment-softmax eps


def _recip_exact(x):
    return 1.0 / x


def _recip_fast(x):
    # EUP approximate reciprocal: frees VPU slots, ~1e-4 rel err.
    return pl.reciprocal(x, approx=True)


def _cast_bf16(x):
    return x.astype(jnp.bfloat16)


def _cast_f32(x):
    return x.astype(jnp.float32)


def _gatv2_dense(x, S_r, T_r, eattr_r, wlr_r, blr_r, we_r, att_r, cb_r, *, lp, recip):
    """GATv2Conv (heads=1, eval) with edge connectivity as one-hot S/T matrices.

    Every matmul operand goes through `lp` (bf16 in the kernel -> MXU-native on
    v5e/v6e/v7x); accumulation is f32 via preferred_element_type."""

    def mm(a, b):
        return jnp.dot(lp(a), lp(b), preferred_element_type=jnp.float32)

    blr = blr_r[...]
    c = blr.shape[-1] // 2
    # Fused lin_l | lin_r projection (one wide matmul), then slice.
    xlr = mm(x, wlr_r[...]) + blr                              # [N, 2C]
    xl = xlr[:, :c]                                            # lin_l(x) -> source msg
    xr = xlr[:, c:]                                            # lin_r(x) -> target
    ef = mm(eattr_r[...], we_r[...])                           # [E, C]

    S = S_r[...]                                               # [E, N] bf16 one-hot (src)
    T = T_r[...]                                               # [E, N] bf16 one-hot (dst)
    src_feat = mm(S, xl)                                       # [E, C]  x_j
    dst_feat = mm(T, xr)                                       # [E, C]  x_i
    h = src_feat + dst_feat + ef
    g = jnp.where(h > 0, h, NEG_SLOPE * h)                     # leaky_relu
    alpha = jnp.sum(g * att_r[...], axis=-1, keepdims=True)    # [E, 1]

    # Segment softmax over destination node.  A single GLOBAL shift is exact:
    # softmax is shift-invariant within each segment and the logit spread here
    # is O(1), far below the f32 exp underflow range (~88).
    m = jnp.max(alpha, axis=0, keepdims=True)                  # [1, 1]
    ex = jnp.exp(alpha - m)                                    # [E, 1]

    # Per-node normalization: scatter-add numerator AND denominator with one
    # T^T contraction (output width C+1), then divide per destination node.
    packed = jnp.concatenate([ex * src_feat, ex], axis=-1)     # [E, C+1]
    agg = jax.lax.dot_general(lp(T), lp(packed),
                              (((0,), (0,)), ((), ())),
                              preferred_element_type=jnp.float32)   # [N, C+1]
    out = agg[:, :c] * recip(agg[:, c:] + SOFTMAX_EPS)         # [N, C]
    return out + cb_r[...]


def _forward_math(feat_r, S_r, T_r, eattr_r, poolT_r, first_r,
                  wlr1, blr1, we1, att1, cb1, sc1, sh1,
                  wlr2, blr2, we2, att2, cb2, sc2, sh2,
                  wfc1a, wfc1b, bfc1, wfc2, bfc2, wfc3, bfc3, wfc4, bfc4,
                  wout, bout, *, lp, recip):
    def mm(a, b):
        return jnp.dot(lp(a), lp(b), preferred_element_type=jnp.float32)

    feat = feat_r[...]
    x = feat[:, :NUM_NODE_FEAT]          # node features (drop receptor cols)
    rec_all = feat[:, NUM_NODE_FEAT:]    # receptor features (last num_rec cols)

    # conv1 -> relu -> bn1 (eval BN folded into scale/shift)
    h = _gatv2_dense(x, S_r, T_r, eattr_r, wlr1, blr1, we1, att1, cb1,
                     lp=lp, recip=recip)
    h = jnp.maximum(h, 0.0)
    h = h * sc1[...] + sh1[...]

    # conv2 -> sigmoid -> bn2 (eval)
    h = _gatv2_dense(h, S_r, T_r, eattr_r, wlr2, blr2, we2, att2, cb2,
                     lp=lp, recip=recip)
    h = 1.0 / (1.0 + jnp.exp(-h))
    h = h * sc2[...] + sh2[...]

    # global_mean_pool: one fused matmul yields per-graph sums AND node counts.
    ones = jnp.ones((h.shape[0], 1), jnp.float32)
    pooled_cnt = mm(poolT_r[...], jnp.concatenate([h, ones], axis=-1))   # [G, H2+1]
    pooled = pooled_cnt[:, :H2] * recip(pooled_cnt[:, H2:])

    # rec_feat: last num_rec cols of first node of each graph.
    rec = mm(first_r[...], rec_all)                                       # [G, R]

    # fc1 on cat([pooled, rec]) == pooled@W1a + rec@W1b + b (avoids concat)
    z = mm(pooled, wfc1a[...]) + mm(rec, wfc1b[...]) + bfc1[...]
    z = jnp.maximum(z, 0.0)
    z = jnp.maximum(mm(z, wfc2[...]) + bfc2[...], 0.0)
    z = jnp.maximum(mm(z, wfc3[...]) + bfc3[...], 0.0)
    z = jnp.maximum(mm(z, wfc4[...]) + bfc4[...], 0.0)
    # dropout / dropout_output are identity in eval
    return mm(z, wout[...]) + bout[...]                                   # [G, 2]


def bitter_gcn_kernel(*refs):
    *in_refs, out_ref = refs
    # Refs are read at their use sites inside _forward_math (no eager bulk load).
    out_ref[...] = _forward_math(*in_refs, lp=_cast_bf16, recip=_recip_fast)


def _vmem_limit_bytes(default=48 * 1024 * 1024):
    # Generation-aware VMEM budget: 3/4 of physical (v5e/v6e 128 MiB, v7x 64 MiB).
    try:
        return (int(pltpu.get_tpu_info().vmem_capacity_bytes) * 3) // 4
    except Exception:
        return default


def bitter_gcn_forward(feat, S, T, eattr, poolT, first, params):
    inputs = (feat, S, T, eattr, poolT, first) + tuple(params)
    G = poolT.shape[0]
    out = pl.pallas_call(
        bitter_gcn_kernel,
        out_shape=jax.ShapeDtypeStruct((G, 2), jnp.float32),
        in_specs=[pl.BlockSpec(memory_space=pltpu.MemorySpace.VMEM)] * len(inputs),
        out_specs=pl.BlockSpec(memory_space=pltpu.MemorySpace.VMEM),
        compiler_params=pltpu.CompilerParams(vmem_limit_bytes=_vmem_limit_bytes()),
    )(*inputs)
    return jnp.squeeze(out)   # matches `x.squeeze()` in the torch module


def reference_matched(feat, S, T, eattr, poolT, first, params):
    """Same math as the kernel (bf16 MXU boundaries, exact divides) via XLA."""
    return jnp.squeeze(_forward_math(feat, S, T, eattr, poolT, first, *params,
                                     lp=_cast_bf16, recip=_recip_exact))


def reference_exact(feat, S, T, eattr, poolT, first, params):
    """Full-f32 reference (connectivity upcast, exact division)."""
    def run():
        return jnp.squeeze(_forward_math(
            feat, _cast_f32(S), _cast_f32(T), eattr, _cast_f32(poolT),
            _cast_f32(first), *params, lp=_cast_f32, recip=_recip_exact))
    try:
        with jax.default_matmul_precision("highest"):
            return run()
    except Exception:
        return run()


# ------------- deterministic parameter / graph construction (glue) -------------

def init_params(key):
    keys = iter(jax.random.split(key, 64))

    def normal(shape, scale):
        return scale * jax.random.normal(next(keys), shape, jnp.float32)

    def uniform(shape, lo, hi):
        return jax.random.uniform(next(keys), shape, jnp.float32, lo, hi)

    F, Fe, R = NUM_NODE_FEAT, NUM_EDGE_FEAT, NUM_REC

    def gat(c_in, c_out):          # GATv2Conv params (weights pre-transposed to [in, out])
        s = 1.0 / np.sqrt(c_in)
        wl = normal((c_in, c_out), s)
        bl = normal((1, c_out), 0.1)
        wr = normal((c_in, c_out), s)
        br = normal((1, c_out), 0.1)
        return [jnp.concatenate([wl, wr], axis=1),          # fused lin_l|lin_r weight
                jnp.concatenate([bl, br], axis=1),          # fused lin_l|lin_r bias
                normal((Fe, c_out), 1.0 / np.sqrt(Fe)),     # lin_edge weight (no bias)
                normal((1, c_out), 1.0 / np.sqrt(c_out)),   # att
                normal((1, c_out), 0.1)]                    # output bias

    def bn(c):
        # Eval BatchNorm1d folded: scale = g*rsqrt(v+eps), shift = b - m*scale.
        g = uniform((1, c), 0.8, 1.2)
        b = normal((1, c), 0.1)
        m = normal((1, c), 0.1)
        v = uniform((1, c), 0.5, 1.5)
        scale = g * jax.lax.rsqrt(v + BN_EPS)
        return [scale, b - m * scale]

    def lin(c_in, c_out):
        s = 1.0 / np.sqrt(c_in)
        return [normal((c_in, c_out), s), normal((1, c_out), s)]

    p = []
    p += gat(F, H1)
    p += bn(H1)
    p += gat(H1, H2)
    p += bn(H2)
    wfc1, bfc1 = lin(H2 + NUM_REC, 32)
    p += [wfc1[:H2, :], wfc1[H2:, :], bfc1]   # split fc1 weight: pooled part / rec part
    p += lin(32, 16)
    p += lin(16, 8)
    p += lin(8, 4)
    p += lin(4, 2)
    return p


def build_graph(nodes_per_graph, num_graphs):
    """Bidirectional ring within each graph; batch vector of graph ids."""
    src, dst = [], []
    for g in range(num_graphs):
        base = g * nodes_per_graph
        for i in range(nodes_per_graph):
            j = (i + 1) % nodes_per_graph
            src += [base + i, base + j]
            dst += [base + j, base + i]
    edge_index = np.array([src, dst], dtype=np.int32)
    batch = np.repeat(np.arange(num_graphs), nodes_per_graph).astype(np.int32)
    return edge_index, batch


if __name__ == "__main__":
    key = jax.random.PRNGKey(0)
    k_feat, k_eattr, k_param = jax.random.split(key, 3)

    num_graphs, nodes_per_graph = 2, 6
    N = num_graphs * nodes_per_graph
    edge_index, batch = build_graph(nodes_per_graph, num_graphs)
    E0 = edge_index.shape[1]

    all_node_feat = jax.random.normal(k_feat, (N, NUM_NODE_FEAT + NUM_REC), jnp.float32)
    edge_attr = jax.random.normal(k_eattr, (E0, NUM_EDGE_FEAT), jnp.float32)

    # GATv2Conv(add_self_loops=True, fill_value='mean'): append self-loop edges whose
    # edge_attr is the mean of incoming edge attrs (preprocessing glue, not hot path).
    src = jnp.asarray(edge_index[0])
    dst = jnp.asarray(edge_index[1])
    sums = jnp.zeros((N, NUM_EDGE_FEAT), jnp.float32).at[dst].add(edge_attr)
    cnts = jnp.zeros((N,), jnp.float32).at[dst].add(1.0)
    loop_attr = sums / jnp.maximum(cnts, 1.0)[:, None]
    loop = jnp.arange(N, dtype=src.dtype)
    src_f = jnp.concatenate([src, loop])
    dst_f = jnp.concatenate([dst, loop])
    eattr_f = jnp.concatenate([edge_attr, loop_attr], axis=0)     # [E0 + N, Fe]

    # One-hot gather/scatter matrices stored as bf16 (0/1 exact; halves HBM bytes,
    # bf16-native on the MXU).
    S = jax.nn.one_hot(src_f, N, dtype=jnp.bfloat16)              # [E, N]
    T = jax.nn.one_hot(dst_f, N, dtype=jnp.bfloat16)              # [E, N]
    poolT = jax.nn.one_hot(jnp.asarray(batch), num_graphs, dtype=jnp.bfloat16).T  # [G, N]
    first_idx = jnp.asarray([int(np.argmax(batch == g)) for g in range(num_graphs)])
    first = jax.nn.one_hot(first_idx, N, dtype=jnp.bfloat16)      # [G, N]

    params = init_params(k_param)

    out = jax.block_until_ready(
        bitter_gcn_forward(all_node_feat, S, T, eattr_f, poolT, first, params))
    ref_bf16 = reference_matched(all_node_feat, S, T, eattr_f, poolT, first, params)
    ref_f32 = reference_exact(all_node_feat, S, T, eattr_f, poolT, first, params)

    assert out.shape == (num_graphs, 2), out.shape
    assert bool(jnp.all(jnp.isfinite(out)))
    # Tight check: kernel vs identical bf16-boundary math (catches lowering bugs;
    # residual is approx-reciprocal / transcendental implementation differences).
    assert float(jnp.max(jnp.abs(out - ref_bf16))) < 1e-2
    # Looser sanity check vs the full-f32 reference (bf16 MXU rounding drift).
    assert float(jnp.max(jnp.abs(out - ref_f32))) < 1e-1
    print("KERNEL_OK")
</pallas_src>

<mosaic_0001>
module attributes {stable_mosaic.version = 11 : i64} {
  func.func @bitter_gcn_kernel(%arg0: memref<12x38xf32, #tpu.memory_space<vmem>>, %arg1: memref<36x12xbf16, #tpu.memory_space<vmem>>, %arg2: memref<36x12xbf16, #tpu.memory_space<vmem>>, %arg3: memref<36x6xf32, #tpu.memory_space<vmem>>, %arg4: memref<2x12xbf16, #tpu.memory_space<vmem>>, %arg5: memref<2x12xbf16, #tpu.memory_space<vmem>>, %arg6: memref<16x64xf32, #tpu.memory_space<vmem>>, %arg7: memref<1x64xf32, #tpu.memory_space<vmem>>, %arg8: memref<6x32xf32, #tpu.memory_space<vmem>>, %arg9: memref<1x32xf32, #tpu.memory_space<vmem>>, %arg10: memref<1x32xf32, #tpu.memory_space<vmem>>, %arg11: memref<1x32xf32, #tpu.memory_space<vmem>>, %arg12: memref<1x32xf32, #tpu.memory_space<vmem>>, %arg13: memref<32x16xf32, #tpu.memory_space<vmem>>, %arg14: memref<1x16xf32, #tpu.memory_space<vmem>>, %arg15: memref<6x8xf32, #tpu.memory_space<vmem>>, %arg16: memref<1x8xf32, #tpu.memory_space<vmem>>, %arg17: memref<1x8xf32, #tpu.memory_space<vmem>>, %arg18: memref<1x8xf32, #tpu.memory_space<vmem>>, %arg19: memref<1x8xf32, #tpu.memory_space<vmem>>, %arg20: memref<8x32xf32, #tpu.memory_space<vmem>>, %arg21: memref<22x32xf32, #tpu.memory_space<vmem>>, %arg22: memref<1x32xf32, #tpu.memory_space<vmem>>, %arg23: memref<32x16xf32, #tpu.memory_space<vmem>>, %arg24: memref<1x16xf32, #tpu.memory_space<vmem>>, %arg25: memref<16x8xf32, #tpu.memory_space<vmem>>, %arg26: memref<1x8xf32, #tpu.memory_space<vmem>>, %arg27: memref<8x4xf32, #tpu.memory_space<vmem>>, %arg28: memref<1x4xf32, #tpu.memory_space<vmem>>, %arg29: memref<4x2xf32, #tpu.memory_space<vmem>>, %arg30: memref<1x2xf32, #tpu.memory_space<vmem>>, %arg31: memref<2x2xf32, #tpu.memory_space<vmem>>) attributes {dimension_semantics = [], scalar_prefetch = 0 : i64, scratch_operands = 0 : i64, tpu.core_type = #tpu.core_type<tc>} {
    %c0 = arith.constant 0 : index
    %c0_0 = arith.constant 0 : index
    %0 = vector.load %arg0[%c0, %c0_0] : memref<12x38xf32, #tpu.memory_space<vmem>>, vector<12x38xf32>
    %1 = vector.extract_strided_slice %0 {offsets = [0, 0], sizes = [12, 16], strides = [1, 1]} : vector<12x38xf32> to vector<12x16xf32>
    %2 = vector.extract_strided_slice %0 {offsets = [0, 16], sizes = [12, 22], strides = [1, 1]} : vector<12x38xf32> to vector<12x22xf32>
    %c0_1 = arith.constant 0 : index
    %c0_2 = arith.constant 0 : index
    %3 = vector.load %arg7[%c0_1, %c0_2] : memref<1x64xf32, #tpu.memory_space<vmem>>, vector<1x64xf32>
    %c0_3 = arith.constant 0 : index
    %c0_4 = arith.constant 0 : index
    %4 = vector.load %arg6[%c0_3, %c0_4] : memref<16x64xf32, #tpu.memory_space<vmem>>, vector<16x64xf32>
    %5 = arith.truncf %1 : vector<12x16xf32> to vector<12x16xbf16>
    %6 = arith.truncf %4 : vector<16x64xf32> to vector<16x64xbf16>
    %cst = arith.constant dense<0.000000e+00> : vector<12x64xf32>
    %7 = tpu.matmul %5, %6, %cst {dimension_numbers = #tpu.dot_dimension_numbers<[1], [0], [0], [1], [0, 0, 1, 1], [], []>} : vector<12x16xbf16>, vector<16x64xbf16>, vector<12x64xf32> -> vector<12x64xf32>
    %8 = vector.broadcast %3 : vector<1x64xf32> to vector<12x64xf32>
    %9 = arith.addf %7, %8 : vector<12x64xf32>
    %10 = vector.extract_strided_slice %9 {offsets = [0, 0], sizes = [12, 32], strides = [1, 1]} : vector<12x64xf32> to vector<12x32xf32>
    %11 = vector.extract_strided_slice %9 {offsets = [0, 32], sizes = [12, 32], strides = [1, 1]} : vector<12x64xf32> to vector<12x32xf32>
    %c0_5 = arith.constant 0 : index
    %c0_6 = arith.constant 0 : index
    %12 = vector.load %arg3[%c0_5, %c0_6] : memref<36x6xf32, #tpu.memory_space<vmem>>, vector<36x6xf32>
    %c0_7 = arith.constant 0 : index
    %c0_8 = arith.constant 0 : index
    %13 = vector.load %arg8[%c0_7, %c0_8] : memref<6x32xf32, #tpu.memory_space<vmem>>, vector<6x32xf32>
    %14 = arith.truncf %12 : vector<36x6xf32> to vector<36x6xbf16>
    %15 = arith.truncf %13 : vector<6x32xf32> to vector<6x32xbf16>
    %cst_9 = arith.constant dense<0.000000e+00> : vector<36x32xf32>
    %16 = tpu.matmul %14, %15, %cst_9 {dimension_numbers = #tpu.dot_dimension_numbers<[1], [0], [0], [1], [0, 0, 1, 1], [], []>} : vector<36x6xbf16>, vector<6x32xbf16>, vector<36x32xf32> -> vector<36x32xf32>
    %c0_10 = arith.constant 0 : index
    %c0_11 = arith.constant 0 : index
    %17 = vector.load %arg1[%c0_10, %c0_11] : memref<36x12xbf16, #tpu.memory_space<vmem>>, vector<36x12xbf16>
    %c0_12 = arith.constant 0 : index
    %c0_13 = arith.constant 0 : index
    %18 = vector.load %arg2[%c0_12, %c0_13] : memref<36x12xbf16, #tpu.memory_space<vmem>>, vector<36x12xbf16>
    %19 = arith.truncf %10 : vector<12x32xf32> to vector<12x32xbf16>
    %cst_14 = arith.constant dense<0.000000e+00> : vector<36x32xf32>
    %20 = tpu.matmul %17, %19, %cst_14 {dimension_numbers = #tpu.dot_dimension_numbers<[1], [0], [0], [1], [0, 0, 1, 1], [], []>} : vector<36x12xbf16>, vector<12x32xbf16>, vector<36x32xf32> -> vector<36x32xf32>
    %21 = arith.truncf %11 : vector<12x32xf32> to vector<12x32xbf16>
    %cst_15 = arith.constant dense<0.000000e+00> : vector<36x32xf32>
    %22 = tpu.matmul %18, %21, %cst_15 {dimension_numbers = #tpu.dot_dimension_numbers<[1], [0], [0], [1], [0, 0, 1, 1], [], []>} : vector<36x12xbf16>, vector<12x32xbf16>, vector<36x32xf32> -> vector<36x32xf32>
    %23 = arith.addf %20, %22 : vector<36x32xf32>
    %24 = arith.addf %23, %16 : vector<36x32xf32>
    %cst_16 = arith.constant 0.000000e+00 : f32
    %25 = vector.broadcast %cst_16 : f32 to vector<36x32xf32>
    %26 = arith.cmpf ogt, %24, %25 : vector<36x32xf32>
    %cst_17 = arith.constant 2.000000e-01 : f32
    %27 = vector.broadcast %cst_17 : f32 to vector<36x32xf32>
    %28 = arith.mulf %27, %24 : vector<36x32xf32>
    %29 = arith.select %26, %24, %28 : vector<36x32xi1>, vector<36x32xf32>
    %c0_18 = arith.constant 0 : index
    %c0_19 = arith.constant 0 : index
    %30 = vector.load %arg9[%c0_18, %c0_19] : memref<1x32xf32, #tpu.memory_space<vmem>>, vector<1x32xf32>
    %31 = vector.broadcast %30 : vector<1x32xf32> to vector<36x32xf32>
    %32 = arith.mulf %29, %31 : vector<36x32xf32>
    %cst_20 = arith.constant dense<0.000000e+00> : vector<36xf32>
    %33 = vector.multi_reduction <add>, %32, %cst_20 [1] : vector<36x32xf32> to vector<36xf32>
    %34 = vector.shape_cast %33 : vector<36xf32> to vector<36x1xf32>
    %cst_21 = arith.constant dense<0xFF800000> : vector<1xf32>
    %35 = vector.multi_reduction <maximumf>, %34, %cst_21 [0] : vector<36x1xf32> to vector<1xf32>
    %36 = vector.shape_cast %35 : vector<1xf32> to vector<1x1xf32>
    %37 = vector.broadcast %36 : vector<1x1xf32> to vector<36x1xf32>
    %38 = arith.subf %34, %37 : vector<36x1xf32>
    %39 = math.exp %38 : vector<36x1xf32>
    %40 = vector.broadcast %39 : vector<36x1xf32> to vector<36x32xf32>
    %41 = arith.mulf %40, %20 : vector<36x32xf32>
    %42 = tpu.concatenate %41, %39 in 1 : vector<36x32xf32>, vector<36x1xf32> -> vector<36x33xf32>
    %43 = arith.truncf %42 : vector<36x33xf32> to vector<36x33xbf16>
    %cst_22 = arith.constant dense<0.000000e+00> : vector<12x33xf32>
    %44 = tpu.matmul %18, %43, %cst_22 {dimension_numbers = #tpu.dot_dimension_numbers<[0], [0], [1], [1], [0, 1, 1, 1], [], []>} : vector<36x12xbf16>, vector<36x33xbf16>, vector<12x33xf32> -> vector<12x33xf32>
    %45 = vector.extract_strided_slice %44 {offsets = [0, 0], sizes = [12, 32], strides = [1, 1]} : vector<12x33xf32> to vector<12x32xf32>
    %46 = vector.extract_strided_slice %44 {offsets = [0, 32], sizes = [12, 1], strides = [1, 1]} : vector<12x33xf32> to vector<12x1xf32>
    %cst_23 = arith.constant 1.000000e-16 : f32
    %47 = vector.broadcast %cst_23 : f32 to vector<12x1xf32>
    %48 = arith.addf %46, %47 : vector<12x1xf32>
    %49 = tpu.reciprocal %48 {approx = true} : vector<12x1xf32> -> vector<12x1xf32>
    %50 = vector.broadcast %49 : vector<12x1xf32> to vector<12x32xf32>
    %51 = arith.mulf %45, %50 : vector<12x32xf32>
    %c0_24 = arith.constant 0 : index
    %c0_25 = arith.constant 0 : index
    %52 = vector.load %arg10[%c0_24, %c0_25] : memref<1x32xf32, #tpu.memory_space<vmem>>, vector<1x32xf32>
    %53 = vector.broadcast %52 : vector<1x32xf32> to vector<12x32xf32>
    %54 = arith.addf %51, %53 : vector<12x32xf32>
    %cst_26 = arith.constant 0.000000e+00 : f32
    %55 = vector.broadcast %cst_26 : f32 to vector<12x32xf32>
    %56 = arith.maximumf %54, %55 : vector<12x32xf32>
    %c0_27 = arith.constant 0 : index
    %c0_28 = arith.constant 0 : index
    %57 = vector.load %arg11[%c0_27, %c0_28] : memref<1x32xf32, #tpu.memory_space<vmem>>, vector<1x32xf32>
    %58 = vector.broadcast %57 : vector<1x32xf32> to vector<12x32xf32>
    %59 = arith.mulf %56, %58 : vector<12x32xf32>
    %c0_29 = arith.constant 0 : index
    %c0_30 = arith.constant 0 : index
    %60 = vector.load %arg12[%c0_29, %c0_30] : memref<1x32xf32, #tpu.memory_space<vmem>>, vector<1x32xf32>
    %61 = vector.broadcast %60 : vector<1x32xf32> to vector<12x32xf32>
    %62 = arith.addf %59, %61 : vector<12x32xf32>
    %c0_31 = arith.constant 0 : index
    %c0_32 = arith.constant 0 : index
    %63 = vector.load %arg14[%c0_31, %c0_32] : memref<1x16xf32, #tpu.memory_space<vmem>>, vector<1x16xf32>
    %c0_33 = arith.constant 0 : index
    %c0_34 = arith.constant 0 : index
    %64 = vector.load %arg13[%c0_33, %c0_34] : memref<32x16xf32, #tpu.memory_space<vmem>>, vector<32x16xf32>
    %65 = arith.truncf %62 : vector<12x32xf32> to vector<12x32xbf16>
    %66 = arith.truncf %64 : vector<32x16xf32> to vector<32x16xbf16>
    %cst_35 = arith.constant dense<0.000000e+00> : vector<12x16xf32>
    %67 = tpu.matmul %65, %66, %cst_35 {dimension_numbers = #tpu.dot_dimension_numbers<[1], [0], [0], [1], [0, 0, 1, 1], [], []>} : vector<12x32xbf16>, vector<32x16xbf16>, vector<12x16xf32> -> vector<12x16xf32>
    %68 = vector.broadcast %63 : vector<1x16xf32> to vector<12x16xf32>
    %69 = arith.addf %67, %68 : vector<12x16xf32>
    %70 = vector.extract_strided_slice %69 {offsets = [0, 0], sizes = [12, 8], strides = [1, 1]} : vector<12x16xf32> to vector<12x8xf32>
    %71 = vector.extract_strided_slice %69 {offsets = [0, 8], sizes = [12, 8], strides = [1, 1]} : vector<12x16xf32> to vector<12x8xf32>
    %c0_36 = arith.constant 0 : index
    %c0_37 = arith.constant 0 : index
    %72 = vector.load %arg3[%c0_36, %c0_37] : memref<36x6xf32, #tpu.memory_space<vmem>>, vector<36x6xf32>
    %c0_38 = arith.constant 0 : index
    %c0_39 = arith.constant 0 : index
    %73 = vector.load %arg15[%c0_38, %c0_39] : memref<6x8xf32, #tpu.memory_space<vmem>>, vector<6x8xf32>
    %74 = arith.truncf %72 : vector<36x6xf32> to vector<36x6xbf16>
    %75 = arith.truncf %73 : vector<6x8xf32> to vector<6x8xbf16>
    %cst_40 = arith.constant dense<0.000000e+00> : vector<36x8xf32>
    %76 = tpu.matmul %74, %75, %cst_40 {dimension_numbers = #tpu.dot_dimension_numbers<[1], [0], [0], [1], [0, 0, 1, 1], [], []>} : vector<36x6xbf16>, vector<6x8xbf16>, vector<36x8xf32> -> vector<36x8xf32>
    %c0_41 = arith.constant 0 : index
    %c0_42 = arith.constant 0 : index
    %77 = vector.load %arg1[%c0_41, %c0_42] : memref<36x12xbf16, #tpu.memory_space<vmem>>, vector<36x12xbf16>
    %c0_43 = arith.constant 0 : index
    %c0_44 = arith.constant 0 : index
    %78 = vector.load %arg2[%c0_43, %c0_44] : memref<36x12xbf16, #tpu.memory_space<vmem>>, vector<36x12xbf16>
    %79 = arith.truncf %70 : vector<12x8xf32> to vector<12x8xbf16>
    %cst_45 = arith.constant dense<0.000000e+00> : vector<36x8xf32>
    %80 = tpu.matmul %77, %79, %cst_45 {dimension_numbers = #tpu.dot_dimension_numbers<[1], [0], [0], [1], [0, 0, 1, 1], [], []>} : vector<36x12xbf16>, vector<12x8xbf16>, vector<36x8xf32> -> vector<36x8xf32>
    %81 = arith.truncf %71 : vector<12x8xf32> to vector<12x8xbf16>
    %cst_46 = arith.constant dense<0.000000e+00> : vector<36x8xf32>
    %82 = tpu.matmul %78, %81, %cst_46 {dimension_numbers = #tpu.dot_dimension_numbers<[1], [0], [0], [1], [0, 0, 1, 1], [], []>} : vector<36x12xbf16>, vector<12x8xbf16>, vector<36x8xf32> -> vector<36x8xf32>
    %83 = arith.addf %80, %82 : vector<36x8xf32>
    %84 = arith.addf %83, %76 : vector<36x8xf32>
    %cst_47 = arith.constant 0.000000e+00 : f32
    %85 = vector.broadcast %cst_47 : f32 to vector<36x8xf32>
    %86 = arith.cmpf ogt, %84, %85 : vector<36x8xf32>
    %cst_48 = arith.constant 2.000000e-01 : f32
    %87 = vector.broadcast %cst_48 : f32 to vector<36x8xf32>
    %88 = arith.mulf %87, %84 : vector<36x8xf32>
    %89 = arith.select %86, %84, %88 : vector<36x8xi1>, vector<36x8xf32>
    %c0_49 = arith.constant 0 : index
    %c0_50 = arith.constant 0 : index
    %90 = vector.load %arg16[%c0_49, %c0_50] : memref<1x8xf32, #tpu.memory_space<vmem>>, vector<1x8xf32>
    %91 = vector.broadcast %90 : vector<1x8xf32> to vector<36x8xf32>
    %92 = arith.mulf %89, %91 : vector<36x8xf32>
    %cst_51 = arith.constant dense<0.000000e+00> : vector<36xf32>
    %93 = vector.multi_reduction <add>, %92, %cst_51 [1] : vector<36x8xf32> to vector<36xf32>
    %94 = vector.shape_cast %93 : vector<36xf32> to vector<36x1xf32>
    %cst_52 = arith.constant dense<0xFF800000> : vector<1xf32>
    %95 = vector.multi_reduction <maximumf>, %94, %cst_52 [0] : vector<36x1xf32> to vector<1xf32>
    %96 = vector.shape_cast %95 : vector<1xf32> to vector<1x1xf32>
    %97 = vector.broadcast %96 : vector<1x1xf32> to vector<36x1xf32>
    %98 = arith.subf %94, %97 : vector<36x1xf32>
    %99 = math.exp %98 : vector<36x1xf32>
    %100 = vector.broadcast %99 : vector<36x1xf32> to vector<36x8xf32>
    %101 = arith.mulf %100, %80 : vector<36x8xf32>
    %102 = tpu.concatenate %101, %99 in 1 : vector<36x8xf32>, vector<36x1xf32> -> vector<36x9xf32>
    %103 = arith.truncf %102 : vector<36x9xf32> to vector<36x9xbf16>
    %cst_53 = arith.constant dense<0.000000e+00> : vector<12x9xf32>
    %104 = tpu.matmul %78, %103, %cst_53 {dimension_numbers = #tpu.dot_dimension_numbers<[0], [0], [1], [1], [0, 1, 1, 1], [], []>} : vector<36x12xbf16>, vector<36x9xbf16>, vector<12x9xf32> -> vector<12x9xf32>
    %105 = vector.extract_strided_slice %104 {offsets = [0, 0], sizes = [12, 8], strides = [1, 1]} : vector<12x9xf32> to vector<12x8xf32>
    %106 = vector.extract_strided_slice %104 {offsets = [0, 8], sizes = [12, 1], strides = [1, 1]} : vector<12x9xf32> to vector<12x1xf32>
    %cst_54 = arith.constant 1.000000e-16 : f32
    %107 = vector.broadcast %cst_54 : f32 to vector<12x1xf32>
    %108 = arith.addf %106, %107 : vector<12x1xf32>
    %109 = tpu.reciprocal %108 {approx = true} : vector<12x1xf32> -> vector<12x1xf32>
    %110 = vector.broadcast %109 : vector<12x1xf32> to vector<12x8xf32>
    %111 = arith.mulf %105, %110 : vector<12x8xf32>
    %c0_55 = arith.constant 0 : index
    %c0_56 = arith.constant 0 : index
    %112 = vector.load %arg17[%c0_55, %c0_56] : memref<1x8xf32, #tpu.memory_space<vmem>>, vector<1x8xf32>
    %113 = vector.broadcast %112 : vector<1x8xf32> to vector<12x8xf32>
    %114 = arith.addf %111, %113 : vector<12x8xf32>
    %cst_57 = arith.constant 0.000000e+00 : f32
    %115 = vector.broadcast %cst_57 : f32 to vector<12x8xf32>
    %116 = arith.subf %115, %114 : vector<12x8xf32>
    %117 = math.exp %116 : vector<12x8xf32>
    %cst_58 = arith.constant 1.000000e+00 : f32
    %118 = vector.broadcast %cst_58 : f32 to vector<12x8xf32>
    %119 = arith.addf %118, %117 : vector<12x8xf32>
    %cst_59 = arith.constant 1.000000e+00 : f32
    %120 = vector.broadcast %cst_59 : f32 to vector<12x8xf32>
    %121 = arith.divf %120, %119 : vector<12x8xf32>
    %c0_60 = arith.constant 0 : index
    %c0_61 = arith.constant 0 : index
    %122 = vector.load %arg18[%c0_60, %c0_61] : memref<1x8xf32, #tpu.memory_space<vmem>>, vector<1x8xf32>
    %123 = vector.broadcast %122 : vector<1x8xf32> to vector<12x8xf32>
    %124 = arith.mulf %121, %123 : vector<12x8xf32>
    %c0_62 = arith.constant 0 : index
    %c0_63 = arith.constant 0 : index
    %125 = vector.load %arg19[%c0_62, %c0_63] : memref<1x8xf32, #tpu.memory_space<vmem>>, vector<1x8xf32>
    %126 = vector.broadcast %125 : vector<1x8xf32> to vector<12x8xf32>
    %127 = arith.addf %124, %126 : vector<12x8xf32>
    %cst_64 = arith.constant 1.000000e+00 : f32
    %128 = vector.broadcast %cst_64 : f32 to vector<12x1xf32>
    %c0_65 = arith.constant 0 : index
    %c0_66 = arith.constant 0 : index
    %129 = vector.load %arg4[%c0_65, %c0_66] : memref<2x12xbf16, #tpu.memory_space<vmem>>, vector<2x12xbf16>
    %130 = tpu.concatenate %127, %128 in 1 : vector<12x8xf32>, vector<12x1xf32> -> vector<12x9xf32>
    %131 = arith.truncf %130 : vector<12x9xf32> to vector<12x9xbf16>
    %cst_67 = arith.constant dense<0.000000e+00> : vector<2x9xf32>
    %132 = tpu.matmul %129, %131, %cst_67 {dimension_numbers = #tpu.dot_dimension_numbers<[1], [0], [0], [1], [0, 0, 1, 1], [], []>} : vector<2x12xbf16>, vector<12x9xbf16>, vector<2x9xf32> -> vector<2x9xf32>
    %133 = vector.extract_strided_slice %132 {offsets = [0, 0], sizes = [2, 8], strides = [1, 1]} : vector<2x9xf32> to vector<2x8xf32>
    %134 = vector.extract_strided_slice %132 {offsets = [0, 8], sizes = [2, 1], strides = [1, 1]} : vector<2x9xf32> to vector<2x1xf32>
    %135 = tpu.reciprocal %134 {approx = true} : vector<2x1xf32> -> vector<2x1xf32>
    %136 = vector.broadcast %135 : vector<2x1xf32> to vector<2x8xf32>
    %137 = arith.mulf %133, %136 : vector<2x8xf32>
    %c0_68 = arith.constant 0 : index
    %c0_69 = arith.constant 0 : index
    %138 = vector.load %arg5[%c0_68, %c0_69] : memref<2x12xbf16, #tpu.memory_space<vmem>>, vector<2x12xbf16>
    %139 = arith.truncf %2 : vector<12x22xf32> to vector<12x22xbf16>
    %cst_70 = arith.constant dense<0.000000e+00> : vector<2x22xf32>
    %140 = tpu.matmul %138, %139, %cst_70 {dimension_numbers = #tpu.dot_dimension_numbers<[1], [0], [0], [1], [0, 0, 1, 1], [], []>} : vector<2x12xbf16>, vector<12x22xbf16>, vector<2x22xf32> -> vector<2x22xf32>
    %c0_71 = arith.constant 0 : index
    %c0_72 = arith.constant 0 : index
    %141 = vector.load %arg20[%c0_71, %c0_72] : memref<8x32xf32, #tpu.memory_space<vmem>>, vector<8x32xf32>
    %142 = arith.truncf %137 : vector<2x8xf32> to vector<2x8xbf16>
    %143 = arith.truncf %141 : vector<8x32xf32> to vector<8x32xbf16>
    %cst_73 = arith.constant dense<0.000000e+00> : vector<2x32xf32>
    %144 = tpu.matmul %142, %143, %cst_73 {dimension_numbers = #tpu.dot_dimension_numbers<[1], [0], [0], [1], [0, 0, 1, 1], [], []>} : vector<2x8xbf16>, vector<8x32xbf16>, vector<2x32xf32> -> vector<2x32xf32>
    %c0_74 = arith.constant 0 : index
    %c0_75 = arith.constant 0 : index
    %145 = vector.load %arg21[%c0_74, %c0_75] : memref<22x32xf32, #tpu.memory_space<vmem>>, vector<22x32xf32>
    %146 = arith.truncf %140 : vector<2x22xf32> to vector<2x22xbf16>
    %147 = arith.truncf %145 : vector<22x32xf32> to vector<22x32xbf16>
    %cst_76 = arith.constant dense<0.000000e+00> : vector<2x32xf32>
    %148 = tpu.matmul %146, %147, %cst_76 {dimension_numbers = #tpu.dot_dimension_numbers<[1], [0], [0], [1], [0, 0, 1, 1], [], []>} : vector<2x22xbf16>, vector<22x32xbf16>, vector<2x32xf32> -> vector<2x32xf32>
    %149 = arith.addf %144, %148 : vector<2x32xf32>
    %c0_77 = arith.constant 0 : index
    %c0_78 = arith.constant 0 : index
    %150 = vector.load %arg22[%c0_77, %c0_78] : memref<1x32xf32, #tpu.memory_space<vmem>>, vector<1x32xf32>
    %151 = vector.broadcast %150 : vector<1x32xf32> to vector<2x32xf32>
    %152 = arith.addf %149, %151 : vector<2x32xf32>
    %cst_79 = arith.constant 0.000000e+00 : f32
    %153 = vector.broadcast %cst_79 : f32 to vector<2x32xf32>
    %154 = arith.maximumf %152, %153 : vector<2x32xf32>
    %c0_80 = arith.constant 0 : index
    %c0_81 = arith.constant 0 : index
    %155 = vector.load %arg23[%c0_80, %c0_81] : memref<32x16xf32, #tpu.memory_space<vmem>>, vector<32x16xf32>
    %156 = arith.truncf %154 : vector<2x32xf32> to vector<2x32xbf16>
    %157 = arith.truncf %155 : vector<32x16xf32> to vector<32x16xbf16>
    %cst_82 = arith.constant dense<0.000000e+00> : vector<2x16xf32>
    %158 = tpu.matmul %156, %157, %cst_82 {dimension_numbers = #tpu.dot_dimension_numbers<[1], [0], [0], [1], [0, 0, 1, 1], [], []>} : vector<2x32xbf16>, vector<32x16xbf16>, vector<2x16xf32> -> vector<2x16xf32>
    %c0_83 = arith.constant 0 : index
    %c0_84 = arith.constant 0 : index
    %159 = vector.load %arg24[%c0_83, %c0_84] : memref<1x16xf32, #tpu.memory_space<vmem>>, vector<1x16xf32>
    %160 = vector.broadcast %159 : vector<1x16xf32> to vector<2x16xf32>
    %161 = arith.addf %158, %160 : vector<2x16xf32>
    %cst_85 = arith.constant 0.000000e+00 : f32
    %162 = vector.broadcast %cst_85 : f32 to vector<2x16xf32>
    %163 = arith.maximumf %161, %162 : vector<2x16xf32>
    %c0_86 = arith.constant 0 : index
    %c0_87 = arith.constant 0 : index
    %164 = vector.load %arg25[%c0_86, %c0_87] : memref<16x8xf32, #tpu.memory_space<vmem>>, vector<16x8xf32>
    %165 = arith.truncf %163 : vector<2x16xf32> to vector<2x16xbf16>
    %166 = arith.truncf %164 : vector<16x8xf32> to vector<16x8xbf16>
    %cst_88 = arith.constant dense<0.000000e+00> : vector<2x8xf32>
    %167 = tpu.matmul %165, %166, %cst_88 {dimension_numbers = #tpu.dot_dimension_numbers<[1], [0], [0], [1], [0, 0, 1, 1], [], []>} : vector<2x16xbf16>, vector<16x8xbf16>, vector<2x8xf32> -> vector<2x8xf32>
    %c0_89 = arith.constant 0 : index
    %c0_90 = arith.constant 0 : index
    %168 = vector.load %arg26[%c0_89, %c0_90] : memref<1x8xf32, #tpu.memory_space<vmem>>, vector<1x8xf32>
    %169 = vector.broadcast %168 : vector<1x8xf32> to vector<2x8xf32>
    %170 = arith.addf %167, %169 : vector<2x8xf32>
    %cst_91 = arith.constant 0.000000e+00 : f32
    %171 = vector.broadcast %cst_91 : f32 to vector<2x8xf32>
    %172 = arith.maximumf %170, %171 : vector<2x8xf32>
    %c0_92 = arith.constant 0 : index
    %c0_93 = arith.constant 0 : index
    %173 = vector.load %arg27[%c0_92, %c0_93] : memref<8x4xf32, #tpu.memory_space<vmem>>, vector<8x4xf32>
    %174 = arith.truncf %172 : vector<2x8xf32> to vector<2x8xbf16>
    %175 = arith.truncf %173 : vector<8x4xf32> to vector<8x4xbf16>
    %cst_94 = arith.constant dense<0.000000e+00> : vector<2x4xf32>
    %176 = tpu.matmul %174, %175, %cst_94 {dimension_numbers = #tpu.dot_dimension_numbers<[1], [0], [0], [1], [0, 0, 1, 1], [], []>} : vector<2x8xbf16>, vector<8x4xbf16>, vector<2x4xf32> -> vector<2x4xf32>
    %c0_95 = arith.constant 0 : index
    %c0_96 = arith.constant 0 : index
    %177 = vector.load %arg28[%c0_95, %c0_96] : memref<1x4xf32, #tpu.memory_space<vmem>>, vector<1x4xf32>
    %178 = vector.broadcast %177 : vector<1x4xf32> to vector<2x4xf32>
    %179 = arith.addf %176, %178 : vector<2x4xf32>
    %cst_97 = arith.constant 0.000000e+00 : f32
    %180 = vector.broadcast %cst_97 : f32 to vector<2x4xf32>
    %181 = arith.maximumf %179, %180 : vector<2x4xf32>
    %c0_98 = arith.constant 0 : index
    %c0_99 = arith.constant 0 : index
    %182 = vector.load %arg29[%c0_98, %c0_99] : memref<4x2xf32, #tpu.memory_space<vmem>>, vector<4x2xf32>
    %183 = arith.truncf %181 : vector<2x4xf32> to vector<2x4xbf16>
    %184 = arith.truncf %182 : vector<4x2xf32> to vector<4x2xbf16>
    %cst_100 = arith.constant dense<0.000000e+00> : vector<2x2xf32>
    %185 = tpu.matmul %183, %184, %cst_100 {dimension_numbers = #tpu.dot_dimension_numbers<[1], [0], [0], [1], [0, 0, 1, 1], [], []>} : vector<2x4xbf16>, vector<4x2xbf16>, vector<2x2xf32> -> vector<2x2xf32>
    %c0_101 = arith.constant 0 : index
    %c0_102 = arith.constant 0 : index
    %186 = vector.load %arg30[%c0_101, %c0_102] : memref<1x2xf32, #tpu.memory_space<vmem>>, vector<1x2xf32>
    %187 = vector.broadcast %186 : vector<1x2xf32> to vector<2x2xf32>
    %188 = arith.addf %185, %187 : vector<2x2xf32>
    %c0_103 = arith.constant 0 : index
    %c0_104 = arith.constant 0 : index
    %189 = vector.load %arg31[%c0_103, %c0_104] : memref<2x2xf32, #tpu.memory_space<vmem>>, vector<2x2xf32>
    tpu.vector_store %arg31[%c0_103, %c0_104], %188 {strides = array<i32>} : memref<2x2xf32, #tpu.memory_space<vmem>>, vector<2x2xf32>,
    return
  }
}

</mosaic_0001>

<llo_original>
// kernel: tpu_custom_call.1
$region0: #{tpu_custom_call.1}
  #allocation0 [shape = 'u32[]', space=smem, size = 0x4, offset = 0x4, fixed_abs, tag = 'smem constant byte address 0x4 - core index']
  #allocation1 [shape = 'u32[72,128]{1,0:T(1,128)}', space=vmem, size = 0x9000, scoped, tag = 'internal scratch']
  %s0 = inlined_call_operand.smem [shape: u32[32], index: -1, kind: input, shape index: {}]
  %s1 = sld [smem:[%s0]]
  %s2 = scalar_lea.smem %s0, 1
  %s3 = sld [smem:[%s2]]
  %s4 = scalar_lea.smem %s0, 2
  %s5 = sld [smem:[%s4]]
  %s6 = scalar_lea.smem %s0, 3
  %s7 = sld [smem:[%s6]]
  %s8 = scalar_lea.smem %s0, 4
  %s9 = sld [smem:[%s8]]
  %s10 = scalar_lea.smem %s0, 5
  %s11 = sld [smem:[%s10]]
  %s12 = scalar_lea.smem %s0, 6
  %s13 = sld [smem:[%s12]]
  %s14 = scalar_lea.smem %s0, 7
  %s15 = sld [smem:[%s14]]
  %s16 = scalar_lea.smem %s0, 8
  %s17 = sld [smem:[%s16]]
  %s18 = scalar_lea.smem %s0, 9
  %s19 = sld [smem:[%s18]]
  %s20 = scalar_lea.smem %s0, 10
  %s21 = sld [smem:[%s20]]
  %s22 = scalar_lea.smem %s0, 11
  %s23 = sld [smem:[%s22]]
  %s24 = scalar_lea.smem %s0, 12
  %s25 = sld [smem:[%s24]]
  %s26 = scalar_lea.smem %s0, 13
  %s27 = sld [smem:[%s26]]
  %s28 = scalar_lea.smem %s0, 14
  %s29 = sld [smem:[%s28]]
  %s30 = scalar_lea.smem %s0, 15
  %s31 = sld [smem:[%s30]]
  %s32 = scalar_lea.smem %s0, 16
  %s33 = sld [smem:[%s32]]
  %s34 = scalar_lea.smem %s0, 17
  %s35 = sld [smem:[%s34]]
  %s36 = scalar_lea.smem %s0, 18
  %s37 = sld [smem:[%s36]]
  %s38 = scalar_lea.smem %s0, 19
  %s39 = sld [smem:[%s38]]
  %s40 = scalar_lea.smem %s0, 20
  %s41 = sld [smem:[%s40]]
  %s42 = scalar_lea.smem %s0, 21
  %s43 = sld [smem:[%s42]]
  %s44 = scalar_lea.smem %s0, 22
  %s45 = sld [smem:[%s44]]
  %s46 = scalar_lea.smem %s0, 23
  %s47 = sld [smem:[%s46]]
  %s48 = scalar_lea.smem %s0, 24
  %s49 = sld [smem:[%s48]]
  %s50 = scalar_lea.smem %s0, 25
  %s51 = sld [smem:[%s50]]
  %s52 = scalar_lea.smem %s0, 26
  %s53 = sld [smem:[%s52]]
  %s54 = scalar_lea.smem %s0, 27
  %s55 = sld [smem:[%s54]]
  %s56 = scalar_lea.smem %s0, 28
  %s57 = sld [smem:[%s56]]
  %s58 = scalar_lea.smem %s0, 29
  %s59 = sld [smem:[%s58]]
  %s60 = scalar_lea.smem %s0, 30
  %s61 = sld [smem:[%s60]]
  %s62 = scalar_lea.smem %s0, 31
  %s63 = sld [smem:[%s62]]
  %s64 = sld [smem:[#allocation0]]
  $region134: #{tpu_custom_call.1} parent=0
    _
  %s66 = ssub.s32 1, %s64
  %s67 = scalar_select 0, %s66, %s64
  $region1: #{tpu_custom_call.1} parent=0
    #allocation2 [shape = 'u8[1024]{0}', space=vmem, size = 0x400, scoped, tag = 'output window, operand 0, single buffered']
    #allocation3 [shape = 's32[1]{0}', space=sflag, size = 0x4, scoped, tag = 'scoped memory for tpu_custom_call.1']
    %68 = vsyncpa [#allocation3], 0
    // Predicated region
    $region2: #{tpu_custom_call.1} parent=1 // pred_check
      _
    $region3: #{tpu_custom_call.1} parent=1 // pred_check_branch
      %70 = sbr.rel (0) target = $region5
    $region4: #{tpu_custom_call.1} parent=1 // pred_region
      _
    $region5: #{tpu_custom_call.1} parent=1 // pred_fallthru
      _
    // Predicated region
    $region6: #{tpu_custom_call.1} parent=1 // pred_check
      _
    $region7: #{tpu_custom_call.1} parent=1 // pred_check_branch
      %72 = sbr.rel (0) target = $region9
    $region8: #{tpu_custom_call.1} parent=1 // pred_region
      _
    $region9: #{tpu_custom_call.1} parent=1 // pred_fallthru
      _
    // Predicated region
    $region10: #{tpu_custom_call.1} parent=1 // pred_check
      _
    $region11: #{tpu_custom_call.1} parent=1 // pred_check_branch
      %74 = sbr.rel (0) target = $region13
    $region12: #{tpu_custom_call.1} parent=1 // pred_region
      _
    $region13: #{tpu_custom_call.1} parent=1 // pred_fallthru
      _
    // Predicated region
    $region14: #{tpu_custom_call.1} parent=1 // pred_check
      _
    $region15: #{tpu_custom_call.1} parent=1 // pred_check_branch
      %76 = sbr.rel (0) target = $region17
    $region16: #{tpu_custom_call.1} parent=1 // pred_region
      _
    $region17: #{tpu_custom_call.1} parent=1 // pred_fallthru
      _
    // Predicated region
    $region18: #{tpu_custom_call.1} parent=1 // pred_check
      _
    $region19: #{tpu_custom_call.1} parent=1 // pred_check_branch
      %78 = sbr.rel (0) target = $region21
    $region20: #{tpu_custom_call.1} parent=1 // pred_region
      _
    $region21: #{tpu_custom_call.1} parent=1 // pred_fallthru
      _
    // Predicated region
    $region22: #{tpu_custom_call.1} parent=1 // pred_check
      _
    $region23: #{tpu_custom_call.1} parent=1 // pred_check_branch
      %80 = sbr.rel (0) target = $region25
    $region24: #{tpu_custom_call.1} parent=1 // pred_region
      _
    $region25: #{tpu_custom_call.1} parent=1 // pred_fallthru
      _
    // Predicated region
    $region26: #{tpu_custom_call.1} parent=1 // pred_check
      _
    $region27: #{tpu_custom_call.1} parent=1 // pred_check_branch
      %82 = sbr.rel (0) target = $region29
    $region28: #{tpu_custom_call.1} parent=1 // pred_region
      _
    $region29: #{tpu_custom_call.1} parent=1 // pred_fallthru
      _
    // Predicated region
    $region30: #{tpu_custom_call.1} parent=1 // pred_check
      _
    $region31: #{tpu_custom_call.1} parent=1 // pred_check_branch
      %84 = sbr.rel (0) target = $region33
    $region32: #{tpu_custom_call.1} parent=1 // pred_region
      _
    $region33: #{tpu_custom_call.1} parent=1 // pred_fallthru
      _
    // Predicated region
    $region34: #{tpu_custom_call.1} parent=1 // pred_check
      _
    $region35: #{tpu_custom_call.1} parent=1 // pred_check_branch
      %86 = sbr.rel (0) target = $region37
    $region36: #{tpu_custom_call.1} parent=1 // pred_region
      _
    $region37: #{tpu_custom_call.1} parent=1 // pred_fallthru
      _
    // Predicated region
    $region38: #{tpu_custom_call.1} parent=1 // pred_check
      _
    $region39: #{tpu_custom_call.1} parent=1 // pred_check_branch
      %88 = sbr.rel (0) target = $region41
    $region40: #{tpu_custom_call.1} parent=1 // pred_region
      _
    $region41: #{tpu_custom_call.1} parent=1 // pred_fallthru
      _
    // Predicated region
    $region42: #{tpu_custom_call.1} parent=1 // pred_check
      _
    $region43: #{tpu_custom_call.1} parent=1 // pred_check_branch
      %90 = sbr.rel (0) target = $region45
    $region44: #{tpu_custom_call.1} parent=1 // pred_region
      _
    $region45: #{tpu_custom_call.1} parent=1 // pred_fallthru
      _
    // Predicated region
    $region46: #{tpu_custom_call.1} parent=1 // pred_check
      _
    $region47: #{tpu_custom_call.1} parent=1 // pred_check_branch
      %92 = sbr.rel (0) target = $region49
    $region48: #{tpu_custom_call.1} parent=1 // pred_region
      _
    $region49: #{tpu_custom_call.1} parent=1 // pred_fallthru
      _
    // Predicated region
    $region50: #{tpu_custom_call.1} parent=1 // pred_check
      _
    $region51: #{tpu_custom_call.1} parent=1 // pred_check_branch
      %94 = sbr.rel (0) target = $region53
    $region52: #{tpu_custom_call.1} parent=1 // pred_region
      _
    $region53: #{tpu_custom_call.1} parent=1 // pred_fallthru
      _
    // Predicated region
    $region54: #{tpu_custom_call.1} parent=1 // pred_check
      _
    $region55: #{tpu_custom_call.1} parent=1 // pred_check_branch
      %96 = sbr.rel (0) target = $region57
    $region56: #{tpu_custom_call.1} parent=1 // pred_region
      _
    $region57: #{tpu_custom_call.1} parent=1 // pred_fallthru
      _
    // Predicated region
    $region58: #{tpu_custom_call.1} parent=1 // pred_check
      _
    $region59: #{tpu_custom_call.1} parent=1 // pred_check_branch
      %98 = sbr.rel (0) target = $region61
    $region60: #{tpu_custom_call.1} parent=1 // pred_region
      _
    $region61: #{tpu_custom_call.1} parent=1 // pred_fallthru
      _
    // Predicated region
    $region62: #{tpu_custom_call.1} parent=1 // pred_check
      _
    $region63: #{tpu_custom_call.1} parent=1 // pred_check_branch
      %100 = sbr.rel (0) target = $region65
    $region64: #{tpu_custom_call.1} parent=1 // pred_region
      _
    $region65: #{tpu_custom_call.1} parent=1 // pred_fallthru
      _
    // Predicated region
    $region66: #{tpu_custom_call.1} parent=1 // pred_check
      _
    $region67: #{tpu_custom_call.1} parent=1 // pred_check_branch
      %102 = sbr.rel (0) target = $region69
    $region68: #{tpu_custom_call.1} parent=1 // pred_region
      _
    $region69: #{tpu_custom_call.1} parent=1 // pred_fallthru
      _
    // Predicated region
    $region70: #{tpu_custom_call.1} parent=1 // pred_check
      _
    $region71: #{tpu_custom_call.1} parent=1 // pred_check_branch
      %104 = sbr.rel (0) target = $region73
    $region72: #{tpu_custom_call.1} parent=1 // pred_region
      _
    $region73: #{tpu_custom_call.1} parent=1 // pred_fallthru
      _
    // Predicated region
    $region74: #{tpu_custom_call.1} parent=1 // pred_check
      _
    $region75: #{tpu_custom_call.1} parent=1 // pred_check_branch
      %106 = sbr.rel (0) target = $region77
    $region76: #{tpu_custom_call.1} parent=1 // pred_region
      _
    $region77: #{tpu_custom_call.1} parent=1 // pred_fallthru
      _
    // Predicated region
    $region78: #{tpu_custom_call.1} parent=1 // pred_check
      _
    $region79: #{tpu_custom_call.1} parent=1 // pred_check_branch
      %108 = sbr.rel (0) target = $region81
    $region80: #{tpu_custom_call.1} parent=1 // pred_region
      _
    $region81: #{tpu_custom_call.1} parent=1 // pred_fallthru
      _
    // Predicated region
    $region82: #{tpu_custom_call.1} parent=1 // pred_check
      _
    $region83: #{tpu_custom_call.1} parent=1 // pred_check_branch
      %110 = sbr.rel (0) target = $region85
    $region84: #{tpu_custom_call.1} parent=1 // pred_region
      _
    $region85: #{tpu_custom_call.1} parent=1 // pred_fallthru
      _
    // Predicated region
    $region86: #{tpu_custom_call.1} parent=1 // pred_check
      _
    $region87: #{tpu_custom_call.1} parent=1 // pred_check_branch
      %112 = sbr.rel (0) target = $region89
    $region88: #{tpu_custom_call.1} parent=1 // pred_region
      _
    $region89: #{tpu_custom_call.1} parent=1 // pred_fallthru
      _
    // Predicated region
    $region90: #{tpu_custom_call.1} parent=1 // pred_check
      _
    $region91: #{tpu_custom_call.1} parent=1 // pred_check_branch
      %114 = sbr.rel (0) target = $region93
    $region92: #{tpu_custom_call.1} parent=1 // pred_region
      _
    $region93: #{tpu_custom_call.1} parent=1 // pred_fallthru
      _
    // Predicated region
    $region94: #{tpu_custom_call.1} parent=1 // pred_check
      _
    $region95: #{tpu_custom_call.1} parent=1 // pred_check_branch
      %116 = sbr.rel (0) target = $region97
    $region96: #{tpu_custom_call.1} parent=1 // pred_region
      _
    $region97: #{tpu_custom_call.1} parent=1 // pred_fallthru
      _
    // Predicated region
    $region98: #{tpu_custom_call.1} parent=1 // pred_check
      _
    $region99: #{tpu_custom_call.1} parent=1 // pred_check_branch
      %118 = sbr.rel (0) target = $region101
    $region100: #{tpu_custom_call.1} parent=1 // pred_region
      _
    $region101: #{tpu_custom_call.1} parent=1 // pred_fallthru
      _
    // Predicated region
    $region102: #{tpu_custom_call.1} parent=1 // pred_check
      _
    $region103: #{tpu_custom_call.1} parent=1 // pred_check_branch
      %120 = sbr.rel (0) target = $region105
    $region104: #{tpu_custom_call.1} parent=1 // pred_region
      _
    $region105: #{tpu_custom_call.1} parent=1 // pred_fallthru
      _
    // Predicated region
    $region106: #{tpu_custom_call.1} parent=1 // pred_check
      _
    $region107: #{tpu_custom_call.1} parent=1 // pred_check_branch
      %122 = sbr.rel (0) target = $region109
    $region108: #{tpu_custom_call.1} parent=1 // pred_region
      _
    $region109: #{tpu_custom_call.1} parent=1 // pred_fallthru
      _
    // Predicated region
    $region110: #{tpu_custom_call.1} parent=1 // pred_check
      _
    $region111: #{tpu_custom_call.1} parent=1 // pred_check_branch
      %124 = sbr.rel (0) target = $region113
    $region112: #{tpu_custom_call.1} parent=1 // pred_region
      _
    $region113: #{tpu_custom_call.1} parent=1 // pred_fallthru
      _
    // Predicated region
    $region114: #{tpu_custom_call.1} parent=1 // pred_check
      _
    $region115: #{tpu_custom_call.1} parent=1 // pred_check_branch
      %126 = sbr.rel (0) target = $region117
    $region116: #{tpu_custom_call.1} parent=1 // pred_region
      _
    $region117: #{tpu_custom_call.1} parent=1 // pred_fallthru
      _
    // Predicated region
    $region118: #{tpu_custom_call.1} parent=1 // pred_check
      _
    $region119: #{tpu_custom_call.1} parent=1 // pred_check_branch
      %128 = sbr.rel (0) target = $region121
    $region120: #{tpu_custom_call.1} parent=1 // pred_region
      _
    $region121: #{tpu_custom_call.1} parent=1 // pred_fallthru
      _
    // Predicated region
    $region122: #{tpu_custom_call.1} parent=1 // pred_check
      _
    $region123: #{tpu_custom_call.1} parent=1 // pred_check_branch
      %130 = sbr.rel (0) target = $region125
    $region124: #{tpu_custom_call.1} parent=1 // pred_region
      _
    $region125: #{tpu_custom_call.1} parent=1 // pred_fallthru
      _
    %v132 = vld [vmem:[%s1] sm:$0xff]
    %v133 = vld [vmem:[%s1 + $0x8] sm:$0xf]
    %v134 = vld [vmem:[%s15] sm:$0x1]
    %v135 = vld [vmem:[%s13] sm:$0xff]
    %v136 = vld [vmem:[%s13 + $0x8] sm:$0xff]
    %v137 = vpack.c.bf16 %v133, %v132
    %v138 = vpack.c.bf16 %v136, %v135
    %v140 = vperm.slane %v134, 0
    %vm142 = vcmask 130048
    %v144 = vsel %vm142, %v137, 0
    %146 = vmatpush.bf16.msra.mxu0 0
    %147 = vmatpush.bf16.msra.mxu0 0
    %148 = vmatpush.bf16.msra.mxu0 0
    %149 = vmatpush.bf16.msra.mxu0 0
    %150 = vmatpush.bf16.msra.mxu0 0
    %151 = vmatpush.bf16.msra.mxu0 0
    %152 = vmatpush.bf16.msra.mxu0 0
    %153 = vmatpush.bf16.msra.mxu0 %v138
    %154 = vmatmul.bf16.gmra.mxu0 %v144
    %v155 = vpop.f32.mrf.mxu0
    %v156 = vadd.f32 %v140, %v155
    %v157 = vpop.f32.mrf.mxu0
    %v158 = vadd.f32 %v140, %v157
    %159 = vdwg.mxu0
    %v160 = vld [vmem:[%s7] sm:$0xff]
    %v161 = vld [vmem:[%s7 + $0x8] sm:$0xff]
    %v162 = vld [vmem:[%s7 + $0x10] sm:$0xff]
    %v163 = vld [vmem:[%s7 + $0x18] sm:$0xff]
    %v164 = vld [vmem:[%s7 + $0x20] sm:$0xf]
    %v165 = vld [vmem:[%s17] sm:$0x3f]
    %v166 = vpack.c.bf16 %v161, %v160
    %v167 = vpack.c.bf16 %v163, %v162
    %v168 = vpack.c.bf16 %v164, %v164
    %v169 = vpack.c.bf16 %v165, %v165
    %vm170 = vcmask 48128
    %v172 = vsel %vm170, %v166, 0
    %v175 = vsel %vm170, %v167, 0
    %v178 = vsel %vm170, %v168, 0
    %vm180 = vcmask 1042432
    %v182 = vsel %vm180, %v169, 0
    %184 = vmatpush.bf16.msra.mxu0 0
    %185 = vmatpush.bf16.msra.mxu0 0
    %186 = vmatpush.bf16.msra.mxu0 0
    %187 = vmatpush.bf16.msra.mxu0 0
    %188 = vmatpush.bf16.msra.mxu0 0
    %189 = vmatpush.bf16.msra.mxu0 0
    %190 = vmatpush.bf16.msra.mxu0 0
    %191 = vmatpush.bf16.msra.mxu0 %v182
    %192 = vmatmul.bf16.gmra.mxu0 %v172
    %v193 = vpop.f32.mrf.mxu0
    %v194 = vadd.f32 0.0, %v193
    %v195 = vpop.f32.mrf.mxu0
    %v196 = vadd.f32 0.0, %v195
    %197 = vmatmul.bf16.gmra.mxu0 %v175
    %v198 = vpop.f32.mrf.mxu0
    %v199 = vadd.f32 0.0, %v198
    %v200 = vpop.f32.mrf.mxu0
    %v201 = vadd.f32 0.0, %v200
    %202 = vmatmul.bf16.gmra.mxu0 %v178
    %v203 = vpop.f32.mrf.mxu0
    %v204 = vadd.f32 0.0, %v203
    %v205 = vpop.f32.mrf.mxu0
    %206 = vdwg.mxu0
    %v207 = vld [vmem:[%s3] sm:$0xf]
    %v208 = vld [vmem:[%s3 + $0x4] sm:$0xf]
    %v209 = vld [vmem:[%s3 + $0x8] sm:$0xf]
    %v210 = vld [vmem:[%s3 + $0xc] sm:$0xf]
    %v211 = vld [vmem:[%s3 + $0x10] sm:$0x3]
    %v212 = vld [vmem:[%s5] sm:$0xf]
    %v213 = vld [vmem:[%s5 + $0x4] sm:$0xf]
    %v214 = vld [vmem:[%s5 + $0x8] sm:$0xf]
    %v215 = vld [vmem:[%s5 + $0xc] sm:$0xf]
    %v216 = vld [vmem:[%s5 + $0x10] sm:$0x3]
    %v217 = vpack.c.bf16 %v158, %v156
    %v223 = vunpack.c.l.b16 %v207
    %v224 = vunpack.c.l.b16 %v208
    %v225 = vunpack.c.l.b16 %v209
    %v226 = vunpack.c.l.b16 %v210
    %v227 = vunpack.c.l.b16 %v211
    %v228 = vpack.c.b16 %v224, %v223
    %v229 = vpack.c.b16 %v226, %v225
    %v230 = vpack.c.b16 %v227, %v227
    %vm231 = vcmask 97280
    %v233 = vsel %vm231, %v228, 0
    %v236 = vsel %vm231, %v229, 0
    %v239 = vsel %vm231, %v230, 0
    %vm241 = vcmask 1045504
    %v243 = vsel %vm241, %v217, 0
    %245 = vmatpush.bf16.msra.mxu0 0
    %246 = vmatpush.bf16.msra.mxu0 0
    %247 = vmatpush.bf16.msra.mxu0 0
    %248 = vmatpush.bf16.msra.mxu0 0
    %249 = vmatpush.bf16.msra.mxu0 0
    %250 = vmatpush.bf16.msra.mxu0 0
    %251 = vmatpush.bf16.msra.mxu0 0
    %252 = vmatpush.bf16.msra.mxu0 %v243
    %253 = vmatmul.bf16.gmra.mxu0 %v233
    %v254 = vpop.f32.mrf.mxu0
    %v255 = vadd.f32 0.0, %v254
    %v256 = vpop.f32.mrf.mxu0
    %v257 = vadd.f32 0.0, %v256
    %258 = vmatmul.bf16.gmra.mxu0 %v236
    %v259 = vpop.f32.mrf.mxu0
    %v260 = vadd.f32 0.0, %v259
    %v261 = vpop.f32.mrf.mxu0
    %v262 = vadd.f32 0.0, %v261
    %263 = vmatmul.bf16.gmra.mxu0 %v239
    %v264 = vpop.f32.mrf.mxu0
    %v265 = vadd.f32 0.0, %v264
    %v266 = vpop.f32.mrf.mxu0
    %267 = vdwg.mxu0
    %v273 = vunpack.c.l.b16 %v212
    %v274 = vunpack.c.l.b16 %v213
    %v275 = vunpack.c.l.b16 %v214
    %v276 = vunpack.c.l.b16 %v215
    %v277 = vunpack.c.l.b16 %v216
    %v278 = vpack.c.b16 %v274, %v273
    %v279 = vpack.c.b16 %v276, %v275
    %v280 = vpack.c.b16 %v277, %v277
    %282 = vrot.lane.b32.xlu0 %v217, 96
    %v283 = vpop.permute.xlu0 %282
    %v285 = vsel %vm231, %v278, 0
    %v288 = vsel %vm231, %v279, 0
    %v291 = vsel %vm231, %v280, 0
    %v294 = vsel %vm241, %v283, 0
    %296 = vmatpush.bf16.msra.mxu0 0
    %297 = vmatpush.bf16.msra.mxu0 0
    %298 = vmatpush.bf16.msra.mxu0 0
    %299 = vmatpush.bf16.msra.mxu0 0
    %300 = vmatpush.bf16.msra.mxu0 0
    %301 = vmatpush.bf16.msra.mxu0 0
    %302 = vmatpush.bf16.msra.mxu0 0
    %303 = vmatpush.bf16.msra.mxu0 %v294
    %304 = vmatmul.bf16.gmra.mxu0 %v285
    %v305 = vpop.f32.mrf.mxu0
    %v306 = vadd.f32 0.0, %v305
    %v307 = vpop.f32.mrf.mxu0
    %v308 = vadd.f32 0.0, %v307
    %309 = vmatmul.bf16.gmra.mxu0 %v288
    %v310 = vpop.f32.mrf.mxu0
    %v311 = vadd.f32 0.0, %v310
    %v312 = vpop.f32.mrf.mxu0
    %v313 = vadd.f32 0.0, %v312
    %314 = vmatmul.bf16.gmra.mxu0 %v291
    %v315 = vpop.f32.mrf.mxu0
    %v316 = vadd.f32 0.0, %v315
    %v317 = vpop.f32.mrf.mxu0
    %318 = vdwg.mxu0
    %v319 = vadd.f32 %v255, %v306
    %v320 = vadd.f32 %v257, %v308
    %v321 = vadd.f32 %v260, %v311
    %v322 = vadd.f32 %v262, %v313
    %v323 = vadd.f32 %v265, %v316
    %v324 = vadd.f32 %v319, %v194
    %v325 = vadd.f32 %v320, %v196
    %v326 = vadd.f32 %v321, %v199
    %v327 = vadd.f32 %v322, %v201
    %v328 = vadd.f32 %v323, %v204
    %vm329 = vcmp.gt.f32.partialorder %v324, 0.0
    %vm330 = vcmp.gt.f32.partialorder %v325, 0.0
    %vm331 = vcmp.gt.f32.partialorder %v326, 0.0
    %vm332 = vcmp.gt.f32.partialorder %v327, 0.0
    %vm333 = vcmp.gt.f32.partialorder %v328, 0.0
    %v334 = vmul.f32 %v324, 0.2
    %v335 = vmul.f32 %v325, 0.2
    %v336 = vmul.f32 %v326, 0.2
    %v337 = vmul.f32 %v327, 0.2
    %v338 = vmul.f32 %v328, 0.2
    %v339 = vsel %vm329, %v324, %v334
    %v340 = vsel %vm330, %v325, %v335
    %v341 = vsel %vm331, %v326, %v336
    %v342 = vsel %vm332, %v327, %v337
    %v343 = vsel %vm333, %v328, %v338
    %v344 = vld [vmem:[%s19] sm:$0x1]
    %v346 = vperm.slane %v344, 0
    %v348 = vmul.f32 %v339, %v346
    %v349 = vmul.f32 %v340, %v346
    %v350 = vmul.f32 %v341, %v346
    %v351 = vmul.f32 %v342, %v346
    %v352 = vmul.f32 %v343, %v346
    %vm353 = vcmask 261120
    %v354 = vsel %vm353, %v348, 0.0
    %355 = vadd.xlane.f32.xlu0 %v354
    %v356 = vpop.xlane.xlu0 %355
    %v357 = vsel %vm353, %v349, 0.0
    %358 = vadd.xlane.f32.xlu0 %v357
    %v359 = vpop.xlane.xlu0 %358
    %v360 = vsel %vm353, %v350, 0.0
    %361 = vadd.xlane.f32.xlu0 %v360
    %v362 = vpop.xlane.xlu0 %361
    %v363 = vsel %vm353, %v351, 0.0
    %364 = vadd.xlane.f32.xlu0 %v363
    %v365 = vpop.xlane.xlu0 %364
    %vm366 = vcmask 257024
    %v367 = vsel %vm366, %v352, 0.0
    %368 = vadd.xlane.f32.xlu0 %v367
    %v369 = vpop.xlane.xlu0 %368
    %vm370 = vcmask 1043456
    %v371 = vsel %vm370, %v369, -inf
    %v372 = vmax.f32 %v356, %v371
    %v373 = vmax.f32 %v372, %v359
    %v374 = vmax.f32 %v362, %v365
    %v375 = vmax.f32 %v373, %v374
    %v376 = vrot.slane %v375, 4
    %v377 = vmax.f32 %v375, %v376
    %v378 = vrot.slane %v377, 2
    %v379 = vmax.f32 %v377, %v378
    %v380 = vrot.slane %v379, 1
    %v381 = vmax.f32 %v379, %v380
    %v382 = vsub.f32 %v356, %v381
    %v383 = vsub.f32 %v359, %v381
    %v384 = vsub.f32 %v362, %v381
    %v385 = vsub.f32 %v365, %v381
    %v386 = vsub.f32 %v369, %v381
    %v387 = vmul.f32 %v382, 1.442695
    %v388 = vpow.pop %v387
    %v389 = vmul.f32 %v383, 1.442695
    %v390 = vpow.pop %v389
    %v391 = vmul.f32 %v384, 1.442695
    %v392 = vpow.pop %v391
    %v393 = vmul.f32 %v385, 1.442695
    %v394 = vpow.pop %v393
    %v395 = vmul.f32 %v386, 1.442695
    %v396 = vpow.pop %v395
    %v397 = vmul.f32 %v388, %v255
    %v398 = vmul.f32 %v390, %v257
    %v399 = vmul.f32 %v392, %v260
    %v400 = vmul.f32 %v394, %v262
    %v401 = vmul.f32 %v396, %v265
    %v402 = vsel %vm353, %v397, %v388
    %v403 = vsel %vm353, %v398, %v390
    %v404 = vsel %vm353, %v399, %v392
    %v405 = vsel %vm353, %v400, %v394
    %v406 = vsel %vm353, %v401, %v396
    %v407 = vpack.c.bf16 %v403, %v402
    %v408 = vpack.c.bf16 %v405, %v404
    %v409 = vpack.c.bf16 %v406, %v406
    %413 = vxpose.xlu0.c.b16.start [1/8] %v278, 128
    %414 = vxpose.xlu0.c.b16.cont [2/8] %v279, 128
    %415 = vxpose.xlu0.c.b16.cont [3/8] %v280, 128
    %416 = vxpose.xlu0.c.b16.cont [4/8] 0, 128
    %417 = vxpose.xlu0.c.b16.cont [5/8] 0, 128
    %418 = vxpose.xlu0.c.b16.cont [6/8] 0, 128
    %419 = vxpose.xlu0.c.b16.cont [7/8] 0, 128
    %420 = vxpose.xlu0.c.b16.end [8/8] 0, 128
    %v421 = vpop.trf.xlu0
    %v422 = vpop.trf.xlu0
    %v423 = vpop.trf.xlu0
    %v424 = vpop.trf.xlu0
    %v425 = vpop.trf.xlu0
    %v426 = vpop.trf.xlu0
    %v427 = vpop.trf.xlu0
    %v428 = vpop.trf.xlu0
    %vm429 = vcmask 293888
    %v431 = vsel %vm429, %v421, 0
    %vm433 = vcmask 1041408
    %v435 = vsel %vm433, %v409, 0
    %437 = vmatpush.bf16.msra.mxu0 0
    %438 = vmatpush.bf16.msra.mxu0 0
    %439 = vmatpush.bf16.msra.mxu0 0
    %440 = vmatpush.bf16.msra.mxu0 0
    %441 = vmatpush.bf16.msra.mxu0 0
    %442 = vmatpush.bf16.msra.mxu0 %v435
    %443 = vmatpush.bf16.msra.mxu0 %v408
    %444 = vmatpush.bf16.msra.mxu0 %v407
    %445 = vmatmul.bf16.gmra.mxu0 %v431
    %v446 = vpop.f32.mrf.mxu0
    %v447 = vadd.f32 0.0, %v446
    %v448 = vpop.f32.mrf.mxu0
    %v449 = vadd.f32 0.0, %v448
    %450 = vdwg.mxu0
    %v451 = vadd.f32 %v447, 1e-16
    %v452 = vadd.f32 %v449, 1e-16
    %v453 = vrcp.pop %v451
    %v454 = vrcp.pop %v452
    %456 = vset.pattern.permute.xlu0 32
    %457 = vperm.xlu0 %456, %v453
    %v458 = vpop.permute.xlu0 %457
    %461 = vset.pattern.permute.xlu0 32
    %462 = vperm.xlu0 %461, %v454
    %v463 = vpop.permute.xlu0 %462
    %v465 = vmul.f32 %v447, %v458
    %v466 = vmul.f32 %v449, %v463
    %v467 = vld [vmem:[%s21] sm:$0x1]
    %v469 = vperm.slane %v467, 0
    %v471 = vadd.f32 %v465, %v469
    %v472 = vadd.f32 %v466, %v469
    %v473 = vmax.f32 %v471, 0.0
    %v474 = vmax.f32 %v472, 0.0
    %v475 = vld [vmem:[%s23] sm:$0x1]
    %v477 = vperm.slane %v475, 0
    %v479 = vmul.f32 %v473, %v477
    %v480 = vmul.f32 %v474, %v477
    %v481 = vld [vmem:[%s25] sm:$0x1]
    %v483 = vperm.slane %v481, 0
    %v485 = vadd.f32 %v479, %v483
    %v486 = vadd.f32 %v480, %v483
    %v487 = vld [vmem:[%s29] sm:$0x1]
    %v488 = vld [vmem:[%s27] sm:$0xff]
    %v489 = vld [vmem:[%s27 + $0x8] sm:$0xff]
    %v490 = vld [vmem:[%s27 + $0x10] sm:$0xff]
    %v491 = vld [vmem:[%s27 + $0x18] sm:$0xff]
    %v492 = vpack.c.bf16 %v486, %v485
    %v493 = vpack.c.bf16 %v489, %v488
    %v494 = vpack.c.bf16 %v491, %v490
    %v496 = vperm.slane %v487, 0
    %v499 = vsel %vm353, %v492, 0
    %501 = vmatpush.bf16.msra.mxu0 0
    %502 = vmatpush.bf16.msra.mxu0 0
    %503 = vmatpush.bf16.msra.mxu0 0
    %504 = vmatpush.bf16.msra.mxu0 0
    %505 = vmatpush.bf16.msra.mxu0 0
    %506 = vmatpush.bf16.msra.mxu0 0
    %507 = vmatpush.bf16.msra.mxu0 %v494
    %508 = vmatpush.bf16.msra.mxu0 %v493
    %509 = vmatmul.bf16.gmra.mxu0 %v499
    %v510 = vpop.f32.mrf.mxu0
    %v511 = vadd.f32 %v496, %v510
    %v512 = vpop.f32.mrf.mxu0
    %v513 = vadd.f32 %v496, %v512
    %514 = vdwg.mxu0
    %v515 = vld [vmem:[%s31] sm:$0x3f]
    %v516 = vpack.c.bf16 %v515, %v515
    %v518 = vsel %vm180, %v516, 0
    %520 = vmatpush.bf16.msra.mxu0 0
    %521 = vmatpush.bf16.msra.mxu0 0
    %522 = vmatpush.bf16.msra.mxu0 0
    %523 = vmatpush.bf16.msra.mxu0 0
    %524 = vmatpush.bf16.msra.mxu0 0
    %525 = vmatpush.bf16.msra.mxu0 0
    %526 = vmatpush.bf16.msra.mxu0 0
    %527 = vmatpush.bf16.msra.mxu0 %v518
    %528 = vmatmul.bf16.gmra.mxu0 %v172
    %v529 = vpop.f32.mrf.mxu0
    %v530 = vadd.f32 0.0, %v529
    %v531 = vpop.f32.mrf.mxu0
    %v532 = vadd.f32 0.0, %v531
    %533 = vmatmul.bf16.gmra.mxu0 %v175
    %v534 = vpop.f32.mrf.mxu0
    %v535 = vadd.f32 0.0, %v534
    %v536 = vpop.f32.mrf.mxu0
    %v537 = vadd.f32 0.0, %v536
    %538 = vmatmul.bf16.gmra.mxu0 %v178
    %v539 = vpop.f32.mrf.mxu0
    %v540 = vadd.f32 0.0, %v539
    %v541 = vpop.f32.mrf.mxu0
    %542 = vdwg.mxu0
    %v543 = vpack.c.bf16 %v513, %v511
    %v545 = vsel %vm241, %v543, 0
    %547 = vmatpush.bf16.msra.mxu0 0
    %548 = vmatpush.bf16.msra.mxu0 0
    %549 = vmatpush.bf16.msra.mxu0 0
    %550 = vmatpush.bf16.msra.mxu0 0
    %551 = vmatpush.bf16.msra.mxu0 0
    %552 = vmatpush.bf16.msra.mxu0 0
    %553 = vmatpush.bf16.msra.mxu0 0
    %554 = vmatpush.bf16.msra.mxu0 %v545
    %555 = vmatmul.bf16.gmra.mxu0 %v233
    %v556 = vpop.f32.mrf.mxu0
    %v557 = vadd.f32 0.0, %v556
    %v558 = vpop.f32.mrf.mxu0
    %v559 = vadd.f32 0.0, %v558
    %560 = vmatmul.bf16.gmra.mxu0 %v236
    %v561 = vpop.f32.mrf.mxu0
    %v562 = vadd.f32 0.0, %v561
    %v563 = vpop.f32.mrf.mxu0
    %v564 = vadd.f32 0.0, %v563
    %565 = vmatmul.bf16.gmra.mxu0 %v239
    %v566 = vpop.f32.mrf.mxu0
    %v567 = vadd.f32 0.0, %v566
    %v568 = vpop.f32.mrf.mxu0
    %569 = vdwg.mxu0
    %571 = vrot.lane.b32.xlu0 %v543, 120
    %v572 = vpop.permute.xlu0 %571
    %v574 = vsel %vm241, %v572, 0
    %576 = vmatpush.bf16.msra.mxu0 0
    %577 = vmatpush.bf16.msra.mxu0 0
    %578 = vmatpush.bf16.msra.mxu0 0
    %579 = vmatpush.bf16.msra.mxu0 0
    %580 = vmatpush.bf16.msra.mxu0 0
    %581 = vmatpush.bf16.msra.mxu0 0
    %582 = vmatpush.bf16.msra.mxu0 0
    %583 = vmatpush.bf16.msra.mxu0 %v574
    %584 = vmatmul.bf16.gmra.mxu0 %v285
    %v585 = vpop.f32.mrf.mxu0
    %v586 = vadd.f32 0.0, %v585
    %v587 = vpop.f32.mrf.mxu0
    %v588 = vadd.f32 0.0, %v587
    %589 = vmatmul.bf16.gmra.mxu0 %v288
    %v590 = vpop.f32.mrf.mxu0
    %v591 = vadd.f32 0.0, %v590
    %v592 = vpop.f32.mrf.mxu0
    %v593 = vadd.f32 0.0, %v592
    %594 = vmatmul.bf16.gmra.mxu0 %v291
    %v595 = vpop.f32.mrf.mxu0
    %v596 = vadd.f32 0.0, %v595
    %v597 = vpop.f32.mrf.mxu0
    %598 = vdwg.mxu0
    %v599 = vadd.f32 %v557, %v586
    %v600 = vadd.f32 %v559, %v588
    %v601 = vadd.f32 %v562, %v591
    %v602 = vadd.f32 %v564, %v593
    %v603 = vadd.f32 %v567, %v596
    %v604 = vadd.f32 %v599, %v530
    %v605 = vadd.f32 %v600, %v532
    %v606 = vadd.f32 %v601, %v535
    %v607 = vadd.f32 %v602, %v537
    %v608 = vadd.f32 %v603, %v540
    %vm609 = vcmp.gt.f32.partialorder %v604, 0.0
    %vm610 = vcmp.gt.f32.partialorder %v605, 0.0
    %vm611 = vcmp.gt.f32.partialorder %v606, 0.0
    %vm612 = vcmp.gt.f32.partialorder %v607, 0.0
    %vm613 = vcmp.gt.f32.partialorder %v608, 0.0
    %v614 = vmul.f32 %v604, 0.2
    %v615 = vmul.f32 %v605, 0.2
    %v616 = vmul.f32 %v606, 0.2
    %v617 = vmul.f32 %v607, 0.2
    %v618 = vmul.f32 %v608, 0.2
    %v619 = vsel %vm609, %v604, %v614
    %v620 = vsel %vm610, %v605, %v615
    %v621 = vsel %vm611, %v606, %v616
    %v622 = vsel %vm612, %v607, %v617
    %v623 = vsel %vm613, %v608, %v618
    %v624 = vld [vmem:[%s33] sm:$0x1]
    %v626 = vperm.slane %v624, 0
    %v628 = vmul.f32 %v619, %v626
    %v629 = vmul.f32 %v620, %v626
    %v630 = vmul.f32 %v621, %v626
    %v631 = vmul.f32 %v622, %v626
    %v632 = vmul.f32 %v623, %v626
    %vm633 = vcmask 64512
    %v634 = vsel %vm633, %v628, 0.0
    %635 = vadd.xlane.f32.xlu0 %v634
    %v636 = vpop.xlane.xlu0 %635
    %v637 = vsel %vm633, %v629, 0.0
    %638 = vadd.xlane.f32.xlu0 %v637
    %v639 = vpop.xlane.xlu0 %638
    %v640 = vsel %vm633, %v630, 0.0
    %641 = vadd.xlane.f32.xlu0 %v640
    %v642 = vpop.xlane.xlu0 %641
    %v643 = vsel %vm633, %v631, 0.0
    %644 = vadd.xlane.f32.xlu0 %v643
    %v645 = vpop.xlane.xlu0 %644
    %vm646 = vcmask 60416
    %v647 = vsel %vm646, %v632, 0.0
    %648 = vadd.xlane.f32.xlu0 %v647
    %v649 = vpop.xlane.xlu0 %648
    %v650 = vsel %vm370, %v649, -inf
    %v651 = vmax.f32 %v636, %v650
    %v652 = vmax.f32 %v651, %v639
    %v653 = vmax.f32 %v642, %v645
    %v654 = vmax.f32 %v652, %v653
    %v655 = vrot.slane %v654, 4
    %v656 = vmax.f32 %v654, %v655
    %v657 = vrot.slane %v656, 2
    %v658 = vmax.f32 %v656, %v657
    %v659 = vrot.slane %v658, 1
    %v660 = vmax.f32 %v658, %v659
    %v661 = vsub.f32 %v636, %v660
    %v662 = vsub.f32 %v639, %v660
    %v663 = vsub.f32 %v642, %v660
    %v664 = vsub.f32 %v645, %v660
    %v665 = vsub.f32 %v649, %v660
    %v666 = vmul.f32 %v661, 1.442695
    %v667 = vpow.pop %v666
    %v668 = vmul.f32 %v662, 1.442695
    %v669 = vpow.pop %v668
    %v670 = vmul.f32 %v663, 1.442695
    %v671 = vpow.pop %v670
    %v672 = vmul.f32 %v664, 1.442695
    %v673 = vpow.pop %v672
    %v674 = vmul.f32 %v665, 1.442695
    %v675 = vpow.pop %v674
    %v676 = vmul.f32 %v667, %v557
    %v677 = vmul.f32 %v669, %v559
    %v678 = vmul.f32 %v671, %v562
    %v679 = vmul.f32 %v673, %v564
    %v680 = vmul.f32 %v675, %v567
    %v681 = vsel %vm633, %v676, %v667
    %v682 = vsel %vm633, %v677, %v669
    %v683 = vsel %vm633, %v678, %v671
    %v684 = vsel %vm633, %v679, %v673
    %v685 = vsel %vm633, %v680, %v675
    %v686 = vpack.c.bf16 %v682, %v681
    %v687 = vpack.c.bf16 %v684, %v683
    %v688 = vpack.c.bf16 %v685, %v685
    %v690 = vsel %vm433, %v688, 0
    %692 = vmatpush.bf16.msra.mxu0 0
    %693 = vmatpush.bf16.msra.mxu0 0
    %694 = vmatpush.bf16.msra.mxu0 0
    %695 = vmatpush.bf16.msra.mxu0 0
    %696 = vmatpush.bf16.msra.mxu0 0
    %697 = vmatpush.bf16.msra.mxu0 %v690
    %698 = vmatpush.bf16.msra.mxu0 %v687
    %699 = vmatpush.bf16.msra.mxu0 %v686
    %700 = vmatmul.bf16.gmra.mxu0 %v431
    %v701 = vpop.f32.mrf.mxu0
    %v702 = vadd.f32 0.0, %v701
    %v703 = vpop.f32.mrf.mxu0
    %v704 = vadd.f32 0.0, %v703
    %705 = vdwg.mxu0
    %v706 = vadd.f32 %v702, 1e-16
    %v707 = vadd.f32 %v704, 1e-16
    %v708 = vrcp.pop %v706
    %v709 = vrcp.pop %v707
    %711 = vset.pattern.permute.xlu0 8
    %712 = vperm.xlu0 %711, %v708
    %v713 = vpop.permute.xlu0 %712
    %716 = vset.pattern.permute.xlu0 8
    %717 = vperm.xlu0 %716, %v709
    %v718 = vpop.permute.xlu0 %717
    %v720 = vmul.f32 %v702, %v713
    %v721 = vmul.f32 %v704, %v718
    %v722 = vld [vmem:[%s35] sm:$0x1]
    %v724 = vperm.slane %v722, 0
    %v726 = vadd.f32 %v720, %v724
    %v727 = vadd.f32 %v721, %v724
    %v728 = vsub.f32 0.0, %v726
    %v729 = vsub.f32 0.0, %v727
    %v730 = vmul.f32 %v728, 1.442695
    %v731 = vpow.pop %v730
    %v732 = vmul.f32 %v729, 1.442695
    %v733 = vpow.pop %v732
    %v734 = vadd.f32 %v731, 1.0
    %v735 = vadd.f32 %v733, 1.0
    %v736 = vrcp.pop %v734
    %v737 = vmul.f32 %v734, %v736
    %v738 = vsub.f32 1.0, %v737
    %v739 = vmul.f32 %v736, %v738
    %v740 = vadd.f32 %v736, %v739
    %vm741 = vweird.f32 %v734
    %vm742 = vweird.f32 %v736
    %vm743 = vmor %vm741, %vm742
    %v744 = vsel %vm743, %v736, %v740
    %v745 = vand.u32 2147483647, %v734
    %vm746 = vcmp.eq.f32.partialorder %v745, 8.507059e+37
    %v747 = vand.u32 %v734, 2147483648
    %v748 = vor.u32 1.1754944e-38, %v747
    %v749 = vsel %vm746, %v748, %v744
    %v750 = vmul.f32 1.0, %v749
    %v751 = vrcp.pop %v735
    %v752 = vmul.f32 %v735, %v751
    %v753 = vsub.f32 1.0, %v752
    %v754 = vmul.f32 %v751, %v753
    %v755 = vadd.f32 %v751, %v754
    %vm756 = vweird.f32 %v735
    %vm757 = vweird.f32 %v751
    %vm758 = vmor %vm756, %vm757
    %v759 = vsel %vm758, %v751, %v755
    %v760 = vand.u32 2147483647, %v735
    %vm761 = vcmp.eq.f32.partialorder %v760, 8.507059e+37
    %v762 = vand.u32 %v735, 2147483648
    %v763 = vor.u32 1.1754944e-38, %v762
    %v764 = vsel %vm761, %v763, %v759
    %v765 = vmul.f32 1.0, %v764
    %v766 = vld [vmem:[%s37] sm:$0x1]
    %v768 = vperm.slane %v766, 0
    %v770 = vmul.f32 %v750, %v768
    %v771 = vmul.f32 %v765, %v768
    %v772 = vld [vmem:[%s39] sm:$0x1]
    %v774 = vperm.slane %v772, 0
    %v776 = vadd.f32 %v770, %v774
    %v777 = vadd.f32 %v771, %v774
    %v778 = vld [vmem:[%s9] sm:$0x1]
    %v779 = vsel %vm633, %v776, 1.0
    %v780 = vsel %vm633, %v777, 1.0
    %v781 = vpack.c.bf16 %v780, %v779
    %v783 = vsel %vm231, %v778, 0
    %v786 = vsel %vm241, %v781, 0
    %788 = vmatpush.bf16.msra.mxu0 0
    %789 = vmatpush.bf16.msra.mxu0 0
    %790 = vmatpush.bf16.msra.mxu0 0
    %791 = vmatpush.bf16.msra.mxu0 0
    %792 = vmatpush.bf16.msra.mxu0 0
    %793 = vmatpush.bf16.msra.mxu0 0
    %794 = vmatpush.bf16.msra.mxu0 0
    %795 = vmatpush.bf16.msra.mxu0 %v786
    %796 = vmatmul.bf16.gmra.mxu0 %v783
    %v797 = vpop.f32.mrf.mxu0
    %v798 = vadd.f32 0.0, %v797
    %v799 = vpop.f32.mrf.mxu0
    %800 = vdwg.mxu0
    %v801 = vrcp.pop %v798
    %803 = vset.pattern.permute.xlu0 8
    %804 = vperm.xlu0 %803, %v801
    %v805 = vpop.permute.xlu0 %804
    %v807 = vmul.f32 %v798, %v805
    %v808 = vld [vmem:[%s11] sm:$0x1]
    %810 = vrot.lane.b32.xlu0 %v137, 112
    %v811 = vpop.permute.xlu0 %810
    %v813 = vsel %vm231, %v808, 0
    %v816 = vsel %vm241, %v811, 0
    %818 = vmatpush.bf16.msra.mxu0 0
    %819 = vmatpush.bf16.msra.mxu0 0
    %820 = vmatpush.bf16.msra.mxu0 0
    %821 = vmatpush.bf16.msra.mxu0 0
    %822 = vmatpush.bf16.msra.mxu0 0
    %823 = vmatpush.bf16.msra.mxu0 0
    %824 = vmatpush.bf16.msra.mxu0 0
    %825 = vmatpush.bf16.msra.mxu0 %v816
    %826 = vmatmul.bf16.gmra.mxu0 %v813
    %v827 = vpop.f32.mrf.mxu0
    %v828 = vadd.f32 0.0, %v827
    %v829 = vpop.f32.mrf.mxu0
    %830 = vdwg.mxu0
    %v831 = vld [vmem:[%s41] sm:$0xff]
    %v832 = vpack.c.bf16 %v807, %v807
    %v833 = vpack.c.bf16 %v831, %v831
    %v834 = vld [vmem:[%s43] sm:$0xff]
    %v835 = vld [vmem:[%s43 + $0x8] sm:$0xff]
    %v836 = vld [vmem:[%s43 + $0x10] sm:$0x3f]
    %v837 = vpack.c.bf16 %v828, %v828
    %v838 = vpack.c.bf16 %v835, %v834
    %v839 = vpack.c.bf16 %v836, %v836
    %vm840 = vcmask 179200
    %v842 = vsel %vm840, %v837, 0
    %v845 = vsel %vm180, %v839, 0
    %847 = vmatpush.bf16.msra.mxu0 0
    %848 = vmatpush.bf16.msra.mxu0 0
    %849 = vmatpush.bf16.msra.mxu0 0
    %850 = vmatpush.bf16.msra.mxu0 0
    %851 = vmatpush.bf16.msra.mxu0 0
    %852 = vmatpush.bf16.msra.mxu0 0
    %853 = vmatpush.bf16.msra.mxu0 %v845
    %854 = vmatpush.bf16.msra.mxu0 %v838
    %855 = vmatmul.bf16.gmra.mxu0 %v842
    %v856 = vpop.f32.mrf.mxu0
    %v857 = vadd.f32 0.0, %v856
    %v858 = vpop.f32.mrf.mxu0
    %859 = vdwg.mxu0
    %v861 = vsel %vm633, %v832, 0
    %v864 = vsel %vm370, %v833, 0
    %866 = vmatpush.bf16.msra.mxu0 0
    %867 = vmatpush.bf16.msra.mxu0 0
    %868 = vmatpush.bf16.msra.mxu0 0
    %869 = vmatpush.bf16.msra.mxu0 0
    %870 = vmatpush.bf16.msra.mxu0 0
    %871 = vmatpush.bf16.msra.mxu0 0
    %872 = vmatpush.bf16.msra.mxu0 0
    %873 = vmatpush.bf16.msra.mxu0 %v864
    %874 = vmatmul.bf16.gmra.mxu0 %v861
    %v875 = vpop.f32.mrf.mxu0
    %v876 = vadd.f32 %v857, %v875
    %v877 = vpop.f32.mrf.mxu0
    %878 = vdwg.mxu0
    %v879 = vld [vmem:[%s45] sm:$0x1]
    %v881 = vperm.slane %v879, 0
    %v883 = vadd.f32 %v876, %v881
    %v884 = vmax.f32 %v883, 0.0
    %v885 = vld [vmem:[%s47] sm:$0xff]
    %v886 = vld [vmem:[%s47 + $0x8] sm:$0xff]
    %v887 = vld [vmem:[%s47 + $0x10] sm:$0xff]
    %v888 = vld [vmem:[%s47 + $0x18] sm:$0xff]
    %v889 = vpack.c.bf16 %v884, %v884
    %v890 = vpack.c.bf16 %v886, %v885
    %v891 = vpack.c.bf16 %v888, %v887
    %v892 = vld [vmem:[%s49] sm:$0x1]
    %v894 = vperm.slane %v892, 0
    %v897 = vsel %vm353, %v889, 0
    %899 = vmatpush.bf16.msra.mxu0 0
    %900 = vmatpush.bf16.msra.mxu0 0
    %901 = vmatpush.bf16.msra.mxu0 0
    %902 = vmatpush.bf16.msra.mxu0 0
    %903 = vmatpush.bf16.msra.mxu0 0
    %904 = vmatpush.bf16.msra.mxu0 0
    %905 = vmatpush.bf16.msra.mxu0 %v891
    %906 = vmatpush.bf16.msra.mxu0 %v890
    %907 = vmatmul.bf16.gmra.mxu0 %v897
    %v908 = vpop.f32.mrf.mxu0
    %v909 = vadd.f32 %v894, %v908
    %v910 = vpop.f32.mrf.mxu0
    %911 = vdwg.mxu0
    %v912 = vmax.f32 %v909, 0.0
    %v913 = vld [vmem:[%s51] sm:$0xff]
    %v914 = vld [vmem:[%s51 + $0x8] sm:$0xff]
    %v915 = vpack.c.bf16 %v912, %v912
    %v916 = vpack.c.bf16 %v914, %v913
    %v917 = vld [vmem:[%s53] sm:$0x1]
    %v919 = vperm.slane %v917, 0
    %v922 = vsel %vm142, %v915, 0
    %924 = vmatpush.bf16.msra.mxu0 0
    %925 = vmatpush.bf16.msra.mxu0 0
    %926 = vmatpush.bf16.msra.mxu0 0
    %927 = vmatpush.bf16.msra.mxu0 0
    %928 = vmatpush.bf16.msra.mxu0 0
    %929 = vmatpush.bf16.msra.mxu0 0
    %930 = vmatpush.bf16.msra.mxu0 0
    %931 = vmatpush.bf16.msra.mxu0 %v916
    %932 = vmatmul.bf16.gmra.mxu0 %v922
    %v933 = vpop.f32.mrf.mxu0
    %v934 = vadd.f32 %v919, %v933
    %v935 = vpop.f32.mrf.mxu0
    %936 = vdwg.mxu0
    %v937 = vmax.f32 %v934, 0.0
    %v938 = vld [vmem:[%s55] sm:$0xff]
    %v939 = vpack.c.bf16 %v937, %v937
    %v940 = vpack.c.bf16 %v938, %v938
    %v941 = vld [vmem:[%s57] sm:$0x1]
    %v943 = vperm.slane %v941, 0
    %v946 = vsel %vm633, %v939, 0
    %v949 = vsel %vm370, %v940, 0
    %951 = vmatpush.bf16.msra.mxu0 0
    %952 = vmatpush.bf16.msra.mxu0 0
    %953 = vmatpush.bf16.msra.mxu0 0
    %954 = vmatpush.bf16.msra.mxu0 0
    %955 = vmatpush.bf16.msra.mxu0 0
    %956 = vmatpush.bf16.msra.mxu0 0
    %957 = vmatpush.bf16.msra.mxu0 0
    %958 = vmatpush.bf16.msra.mxu0 %v949
    %959 = vmatmul.bf16.gmra.mxu0 %v946
    %v960 = vpop.f32.mrf.mxu0
    %v961 = vadd.f32 %v943, %v960
    %v962 = vpop.f32.mrf.mxu0
    %963 = vdwg.mxu0
    %v964 = vmax.f32 %v961, 0.0
    %v965 = vld [vmem:[%s59] sm:$0xf]
    %v966 = vpack.c.bf16 %v964, %v964
    %v967 = vpack.c.bf16 %v965, %v965
    %v968 = vld [vmem:[%s61] sm:$0x1]
    %v970 = vperm.slane %v968, 0
    %vm972 = vcmask 31744
    %v974 = vsel %vm972, %v966, 0
    %v977 = vsel %vm433, %v967, 0
    %979 = vmatpush.bf16.msra.mxu0 0
    %980 = vmatpush.bf16.msra.mxu0 0
    %981 = vmatpush.bf16.msra.mxu0 0
    %982 = vmatpush.bf16.msra.mxu0 0
    %983 = vmatpush.bf16.msra.mxu0 0
    %984 = vmatpush.bf16.msra.mxu0 0
    %985 = vmatpush.bf16.msra.mxu0 0
    %986 = vmatpush.bf16.msra.mxu0 %v977
    %987 = vmatmul.bf16.gmra.mxu0 %v974
    %v988 = vpop.f32.mrf.mxu0
    %v989 = vadd.f32 %v970, %v988
    %v990 = vpop.f32.mrf.mxu0
    %991 = vdwg.mxu0
    %vm992 = vcmask 9216
    %993 = vst.msk [vmem:[#allocation2] sm:$0x3] %vm992, %v989
    // Predicated region
    $region126: #{tpu_custom_call.1} parent=1 // pred_check
      _
    $region127: #{tpu_custom_call.1} parent=1 // pred_check_branch
      %995 = sbr.rel (0) target = $region129
    $region128: #{tpu_custom_call.1} parent=1 // pred_region
      %997 = vsyncadd [#allocation3], 0
      %s999 = sshll.u32 [#allocation2], 4
      %s1000 = int_to_ptr.vmem [resolvable:$true] %s999
      %s1001 = sshll.u32 %s63, 4
      %s1002 = int_to_ptr.hbm [resolvable:$true] %s1001
      %1004 = dma.vmem_to_hbm [thread:$0]  %s1000, 32, %s1002, [#allocation3]
    $region129: #{tpu_custom_call.1} parent=1 // pred_fallthru
      _
    // Predicated region
    $region130: #{tpu_custom_call.1} parent=1 // pred_check
      _
    $region131: #{tpu_custom_call.1} parent=1 // pred_check_branch
      %1006 = sbr.rel (0) target = $region133
    $region132: #{tpu_custom_call.1} parent=1 // pred_region
      %1008 = dma.done [#allocation3], 32
    $region133: #{tpu_custom_call.1} parent=1 // pred_fallthru
      _
    %1009 = vsyncpa [#allocation3], 1

</llo_original>
